<compile_context>
chip_gen: v6e
topology: v6e:2x2x1
jax: 0.10.0
libtpu: 0.0.40
codegen_flags: <defaults>
</compile_context>

<pallas_src>
import functools

import jax
import jax.numpy as jnp
from jax.experimental import pallas as pl
from jax.experimental.pallas import tpu as pltpu


# ---------------------------------------------------------------------------
# Fused kernel: conv1 GEMM -> conv2 (single K=k2*k2*c1 GEMM on a VMEM im2col)
#               -> crop/transpose/flatten -> head GEMM.  One block of `spb`
#               samples per grid step.
# ---------------------------------------------------------------------------
def _encoder_kernel(p1_ref, w1_ref, b1_ref, w2_ref, b2_ref, wh_ref, bh_ref,
                    conv_ref, c_ref, p2_sc, a2c_sc, flat_sc,
                    *, spb, r1p, r2, ow1, ow2, oh2, k2, c1, c2):
    hw = oh2 * ow2

    # ---- conv1: one big-M GEMM over every sample in this block -------------
    # Patches arrive as int8 (uint8 - 128, offset folded into b1) or bf16.
    x = p1_ref[0].astype(jnp.float32).astype(jnp.bfloat16)      # (spb*r1p, K1)
    a1 = jnp.dot(x, w1_ref[...], preferred_element_type=jnp.float32)
    a1 = jnp.maximum(a1 + b1_ref[...], 0.0)                     # (spb*r1p, c1) f32

    # ---- conv2: assemble one im2col matrix in VMEM, single GEMM ------------
    # Tap (i, j) of the stride-1 conv reads conv1 rows shifted by i*ow1 + j.
    for t in range(k2 * k2):
        i, j = divmod(t, k2)
        off = i * ow1 + j
        for s in range(spb):
            p2_sc[s * r2:(s + 1) * r2, t * c1:(t + 1) * c1] = (
                a1[s * r1p + off: s * r1p + off + r2, :])
    a2 = jnp.dot(p2_sc[...].astype(jnp.bfloat16), w2_ref[...],
                 preferred_element_type=jnp.float32)
    a2 = jnp.maximum(a2 + b2_ref[...], 0.0)                     # (spb*r2, c2) f32

    # ---- per-sample crop (x < ow2), NCHW transpose, flatten ----------------
    # flat row of sample s is exactly torch's conv.view(T*B, -1) row.
    for s in range(spb):
        for y in range(oh2):
            a2c_sc[y * ow2:(y + 1) * ow2, :] = (
                a2[s * r2 + y * ow1: s * r2 + y * ow1 + ow2, :])
        a2t = a2c_sc[...].T                                      # (c2, hw) == NCHW tile
        for ch in range(c2):
            flat_sc[s:s + 1, ch * hw:(ch + 1) * hw] = a2t[ch:ch + 1, :]

    flat = flat_sc[...]                                          # (spb, c2*hw) f32
    conv_ref[0] = flat                                           # lane-dense store

    # ---- fused head: (spb, conv_out) x (conv_out, latent_pad) GEMM ---------
    c_ref[0] = (jnp.dot(flat.astype(jnp.bfloat16), wh_ref[...],
                        preferred_element_type=jnp.float32) + bh_ref[...])


# ---------------------------------------------------------------------------
# Wrapper-side layout glue
# ---------------------------------------------------------------------------
def _im2col_nchw(x, k, s):
    """x: (N, C, H, W) -> patches (N, OH*OW, C*k*k), columns ordered (c,kh,kw)
    to match torch Conv2d weight flattening.  Runs on the input dtype (uint8
    stays 1 byte/elem)."""
    n, c, h, w = x.shape
    oh = (h - k) // s + 1
    ow = (w - k) // s + 1
    cols = []
    for i in range(k):
        for j in range(k):
            cols.append(x[:, :, i:i + s * oh:s, j:j + s * ow:s])  # (N,C,OH,OW)
    p = jnp.stack(cols, axis=2)                 # (N, C, k*k, OH, OW)
    p = p.transpose(0, 3, 4, 1, 2)              # (N, OH, OW, C, k*k)
    return p.reshape(n, oh * ow, c * k * k), oh, ow


# ---------------------------------------------------------------------------
# UlEncoderModel forward
# ---------------------------------------------------------------------------
def ul_encoder_forward(observation, params):
    """Reproduces UlEncoderModel.forward.  Returns (c, conv)."""
    img_shape = observation.shape[-3:]
    lead_dim = observation.ndim - 3
    if lead_dim == 0:
        T, B = 1, 1
    elif lead_dim == 1:
        T, B = 1, observation.shape[0]
    elif lead_dim == 2:
        T, B = observation.shape[0], observation.shape[1]
    else:
        raise ValueError("at most 2 leading dims supported")
    TB = T * B

    (w1, b1, s1), (w2, b2, s2) = params["conv"]
    c1_out, c_in, k1, _ = w1.shape
    c2_out, _, k2, _ = w2.shape
    assert s2 == 1, "fused kernel assumes the second conv has stride 1"

    x = observation.reshape(TB, *img_shape)

    # --- conv1 patches straight from the raw observation (1 byte/elem) ------
    if observation.dtype == jnp.uint8:
        w1_eff = w1.astype(jnp.float32) * (1.0 / 255.0)   # fold uint8 scale
        p1, oh1, ow1 = _im2col_nchw(x, k1, s1)
        # Keep the dominant HBM stream at 1 byte/elem: shift to int8 (exact),
        # the +128 offset is compensated in conv1's bias below.
        p1 = (p1.astype(jnp.int16) - 128).astype(jnp.int8)
        u8_offset = 128.0
    else:
        w1_eff = w1.astype(jnp.float32)
        p1, oh1, ow1 = _im2col_nchw(x.astype(jnp.float32), k1, s1)
        p1 = p1.astype(jnp.bfloat16)
        u8_offset = 0.0

    oh2 = oh1 - k2 + 1
    ow2 = ow1 - k2 + 1
    r2 = oh2 * ow1                       # conv2 rows computed per sample
    r1p = (k2 - 1) * (ow1 + 1) + r2      # conv1 rows the shifted taps need
    k1dim = c_in * k1 * k1
    hw = oh2 * ow2
    conv_flat_dim = c2_out * hw

    # Pad rows read only by cropped (x >= ow2) conv2 outputs -> never returned.
    p1 = jnp.pad(p1, ((0, 0), (0, r1p - oh1 * ow1), (0, 0)))

    # Sample blocking: 2 blocks when possible (both v7x TCs busy, amortized
    # per-step overhead), otherwise a single block.
    nb = 2 if (TB % 2 == 0 and TB >= 2) else 1
    spb = TB // nb
    p1 = p1.reshape(nb, spb * r1p, k1dim)          # free contiguous reshape

    # --- one-time weight repacking (done at param-load time in deployment) --
    w1m = w1_eff.reshape(c1_out, k1dim).T.astype(jnp.bfloat16)          # (K1, C1)
    b1r = (b1.astype(jnp.float32)
           + u8_offset * jnp.sum(w1m.astype(jnp.float32), axis=0)
           ).reshape(1, c1_out)
    w2m = (w2.astype(jnp.float32).transpose(2, 3, 1, 0)                 # (kh,kw,I,O)
              .reshape(k2 * k2 * c1_out, c2_out).astype(jnp.bfloat16))
    b2r = b2.reshape(1, c2_out).astype(jnp.float32)

    head_w, head_b = params["head_w"], params["head_b"]
    latent, kh = head_w.shape
    assert kh == conv_flat_dim
    n_pad = ((latent + 127) // 128) * 128            # lane-dense head output
    whm = jnp.pad(head_w.astype(jnp.float32),
                  ((0, n_pad - latent), (0, 0))).T.astype(jnp.bfloat16)  # (kh, n_pad)
    bhr = jnp.pad(head_b.astype(jnp.float32),
                  (0, n_pad - latent)).reshape(1, n_pad)

    kernel = functools.partial(
        _encoder_kernel, spb=spb, r1p=r1p, r2=r2, ow1=ow1, ow2=ow2,
        oh2=oh2, k2=k2, c1=c1_out, c2=c2_out)

    conv_flat_out, c_pad = pl.pallas_call(
        kernel,
        out_shape=(jax.ShapeDtypeStruct((nb, spb, conv_flat_dim), jnp.float32),
                   jax.ShapeDtypeStruct((nb, spb, n_pad), jnp.float32)),
        grid=(nb,),
        in_specs=[
            pl.BlockSpec((1, spb * r1p, k1dim), lambda n: (n, 0, 0)),    # patches
            pl.BlockSpec((k1dim, c1_out), lambda n: (0, 0)),             # conv1 w
            pl.BlockSpec((1, c1_out), lambda n: (0, 0)),                 # conv1 b
            pl.BlockSpec((k2 * k2 * c1_out, c2_out), lambda n: (0, 0)),  # conv2 w
            pl.BlockSpec((1, c2_out), lambda n: (0, 0)),                 # conv2 b
            pl.BlockSpec((kh, n_pad), lambda n: (0, 0)),                 # head w^T
            pl.BlockSpec((1, n_pad), lambda n: (0, 0)),                  # head b
        ],
        out_specs=(
            pl.BlockSpec((1, spb, conv_flat_dim), lambda n: (n, 0, 0)),
            pl.BlockSpec((1, spb, n_pad), lambda n: (n, 0, 0)),
        ),
        scratch_shapes=[
            pltpu.VMEM((spb * r2, k2 * k2 * c1_out), jnp.float32),  # conv2 im2col
            pltpu.VMEM((hw, c2_out), jnp.float32),                  # cropped tile
            pltpu.VMEM((spb, conv_flat_dim), jnp.float32),          # flat rows
        ],
        compiler_params=pltpu.CompilerParams(
            dimension_semantics=("parallel",)),
    )(p1, w1m, b1r, w2m, b2r, whm, bhr)

    # Only free contiguous reshapes + the tiny latent un-pad remain outside.
    conv_out = conv_flat_out.reshape(TB, c2_out, oh2, ow2)
    c = c_pad.reshape(TB, n_pad)[:, :latent]

    # restore_leading_dims
    if lead_dim == 2:
        c = c.reshape(T, B, *c.shape[1:])
        conv_out = conv_out.reshape(T, B, *conv_out.shape[1:])
    elif lead_dim == 1:
        c = c.reshape(B, *c.shape[1:])
        conv_out = conv_out.reshape(B, *conv_out.shape[1:])
    else:
        c = c.reshape(*c.shape[1:])
        conv_out = conv_out.reshape(*conv_out.shape[1:])
    return c, conv_out


# ---------------------------------------------------------------------------
# Pure-JAX f32 reference (correctness check only)
# ---------------------------------------------------------------------------
def _ref_forward(observation, params):
    T, B = observation.shape[0], observation.shape[1]
    img = observation.astype(jnp.float32) / 255.0
    x = img.reshape(T * B, *observation.shape[2:])
    for (w, b, s) in params["conv"]:
        x = jax.lax.conv_general_dilated(
            x, w, (s, s), "VALID",
            dimension_numbers=("NCHW", "OIHW", "NCHW"))
        x = jnp.maximum(x + b[None, :, None, None], 0.0)
    flat = x.reshape(T * B, -1)
    c = flat @ params["head_w"].T + params["head_b"]
    return (c.reshape(T, B, -1),
            x.reshape(T, B, *x.shape[1:]))


# ---------------------------------------------------------------------------
# Main
# ---------------------------------------------------------------------------
if __name__ == "__main__":
    # Small shapes: T=2, B=2, C=4, H=W=16.
    T, B, C, H, W = 2, 2, 4, 16, 16
    latent_size = 32

    key = jax.random.PRNGKey(0)
    k_obs, kk1, kk2, kk3, kk4, kk5, kk6 = jax.random.split(key, 7)

    observation = jax.random.randint(
        k_obs, (T, B, C, H, W), 0, 256, dtype=jnp.int32).astype(jnp.uint8)

    # Conv encoder: Conv(4->8, k3, s2) + ReLU, Conv(8->16, k3, s1) + ReLU.
    # 16x16 -> 7x7 -> 5x5  =>  conv_out_size = 16 * 5 * 5 = 400.
    conv_out_size = 16 * 5 * 5
    params = {
        "conv": [
            (jax.random.normal(kk1, (8, 4, 3, 3), jnp.float32) * 0.1,
             jax.random.normal(kk2, (8,), jnp.float32) * 0.01,
             2),
            (jax.random.normal(kk3, (16, 8, 3, 3), jnp.float32) * 0.1,
             jax.random.normal(kk4, (16,), jnp.float32) * 0.01,
             1),
        ],
        "head_w": jax.random.normal(
            kk5, (latent_size, conv_out_size), jnp.float32) * 0.05,
        "head_b": jax.random.normal(kk6, (latent_size,), jnp.float32) * 0.01,
    }

    c, conv = jax.block_until_ready(ul_encoder_forward(observation, params))
    assert c.shape == (T, B, latent_size), c.shape
    assert conv.shape == (T, B, 16, 5, 5), conv.shape

    c_ref, conv_ref = _ref_forward(observation, params)
    # bf16 MXU operands (f32 accumulation) -> allow small numerical drift.
    assert jnp.allclose(conv, conv_ref, atol=5e-2, rtol=5e-2), (
        float(jnp.max(jnp.abs(conv - conv_ref))))
    assert jnp.allclose(c, c_ref, atol=5e-2, rtol=5e-2), (
        float(jnp.max(jnp.abs(c - c_ref))))

    print("KERNEL_OK")
</pallas_src>

<mosaic_0001>
module attributes {stable_mosaic.version = 11 : i64} {
  func.func @_encoder_kernel(%arg0: i32, %arg1: memref<1x102x36xi8, #tpu.memory_space<vmem>>, %arg2: memref<36x8xbf16, #tpu.memory_space<vmem>>, %arg3: memref<1x8xf32, #tpu.memory_space<vmem>>, %arg4: memref<72x16xbf16, #tpu.memory_space<vmem>>, %arg5: memref<1x16xf32, #tpu.memory_space<vmem>>, %arg6: memref<400x128xbf16, #tpu.memory_space<vmem>>, %arg7: memref<1x128xf32, #tpu.memory_space<vmem>>, %arg8: memref<1x2x400xf32, #tpu.memory_space<vmem>>, %arg9: memref<1x2x128xf32, #tpu.memory_space<vmem>>, %arg10: memref<70x72xf32, #tpu.memory_space<vmem>>, %arg11: memref<25x16xf32, #tpu.memory_space<vmem>>, %arg12: memref<2x400xf32, #tpu.memory_space<vmem>>) attributes {dimension_semantics = [#tpu.dimension_semantics<parallel>], iteration_bounds = array<i64: 2>, scalar_prefetch = 0 : i64, scratch_operands = 3 : i64, tpu.core_type = #tpu.core_type<tc>, window_params = [{transform_indices = @transform_0, window_bounds = array<i64: 1, 102, 36>}, {pipeline_mode = #tpu.pipeline_mode<synchronous>, transform_indices = @transform_1, window_bounds = array<i64: 36, 8>}, {pipeline_mode = #tpu.pipeline_mode<synchronous>, transform_indices = @transform_2, window_bounds = array<i64: 1, 8>}, {pipeline_mode = #tpu.pipeline_mode<synchronous>, transform_indices = @transform_3, window_bounds = array<i64: 72, 16>}, {pipeline_mode = #tpu.pipeline_mode<synchronous>, transform_indices = @transform_4, window_bounds = array<i64: 1, 16>}, {pipeline_mode = #tpu.pipeline_mode<synchronous>, transform_indices = @transform_5, window_bounds = array<i64: 400, 128>}, {pipeline_mode = #tpu.pipeline_mode<synchronous>, transform_indices = @transform_6, window_bounds = array<i64: 1, 128>}, {transform_indices = @transform_7, window_bounds = array<i64: 1, 2, 400>}, {transform_indices = @transform_8, window_bounds = array<i64: 1, 2, 128>}]} {
    %c0 = arith.constant 0 : index
    %c0_0 = arith.constant 0 : index
    %c0_1 = arith.constant 0 : index
    %0 = vector.load %arg1[%c0, %c0_0, %c0_1] : memref<1x102x36xi8, #tpu.memory_space<vmem>>, vector<1x102x36xi8>
    %1 = vector.shape_cast %0 : vector<1x102x36xi8> to vector<102x36xi8>
    %2 = arith.sitofp %1 : vector<102x36xi8> to vector<102x36xf32>
    %3 = arith.truncf %2 : vector<102x36xf32> to vector<102x36xbf16>
    %c0_2 = arith.constant 0 : index
    %c0_3 = arith.constant 0 : index
    %4 = vector.load %arg2[%c0_2, %c0_3] : memref<36x8xbf16, #tpu.memory_space<vmem>>, vector<36x8xbf16>
    %cst = arith.constant dense<0.000000e+00> : vector<102x8xf32>
    %5 = tpu.matmul %3, %4, %cst {dimension_numbers = #tpu.dot_dimension_numbers<[1], [0], [0], [1], [0, 0, 1, 1], [], []>} : vector<102x36xbf16>, vector<36x8xbf16>, vector<102x8xf32> -> vector<102x8xf32>
    %c0_4 = arith.constant 0 : index
    %c0_5 = arith.constant 0 : index
    %6 = vector.load %arg3[%c0_4, %c0_5] : memref<1x8xf32, #tpu.memory_space<vmem>>, vector<1x8xf32>
    %7 = vector.broadcast %6 : vector<1x8xf32> to vector<102x8xf32>
    %8 = arith.addf %5, %7 : vector<102x8xf32>
    %cst_6 = arith.constant 0.000000e+00 : f32
    %9 = vector.broadcast %cst_6 : f32 to vector<102x8xf32>
    %10 = arith.maximumf %8, %9 : vector<102x8xf32>
    %11 = vector.extract_strided_slice %10 {offsets = [0, 0], sizes = [35, 8], strides = [1, 1]} : vector<102x8xf32> to vector<35x8xf32>
    %c0_7 = arith.constant 0 : index
    %c0_8 = arith.constant 0 : index
    %12 = vector.load %arg10[%c0_7, %c0_8] : memref<70x72xf32, #tpu.memory_space<vmem>>, vector<35x8xf32>
    tpu.vector_store %arg10[%c0_7, %c0_8], %11 {strides = array<i32>} : memref<70x72xf32, #tpu.memory_space<vmem>>, vector<35x8xf32>,
    %13 = vector.extract_strided_slice %10 {offsets = [51, 0], sizes = [35, 8], strides = [1, 1]} : vector<102x8xf32> to vector<35x8xf32>
    %c35 = arith.constant 35 : index
    %c0_9 = arith.constant 0 : index
    %14 = vector.load %arg10[%c35, %c0_9] : memref<70x72xf32, #tpu.memory_space<vmem>>, vector<35x8xf32>
    tpu.vector_store %arg10[%c35, %c0_9], %13 {strides = array<i32>} : memref<70x72xf32, #tpu.memory_space<vmem>>, vector<35x8xf32>,
    %15 = vector.extract_strided_slice %10 {offsets = [1, 0], sizes = [35, 8], strides = [1, 1]} : vector<102x8xf32> to vector<35x8xf32>
    %c0_10 = arith.constant 0 : index
    %c8 = arith.constant 8 : index
    %16 = vector.load %arg10[%c0_10, %c8] : memref<70x72xf32, #tpu.memory_space<vmem>>, vector<35x8xf32>
    tpu.vector_store %arg10[%c0_10, %c8], %15 {strides = array<i32>} : memref<70x72xf32, #tpu.memory_space<vmem>>, vector<35x8xf32>,
    %17 = vector.extract_strided_slice %10 {offsets = [52, 0], sizes = [35, 8], strides = [1, 1]} : vector<102x8xf32> to vector<35x8xf32>
    %c35_11 = arith.constant 35 : index
    %c8_12 = arith.constant 8 : index
    %18 = vector.load %arg10[%c35_11, %c8_12] : memref<70x72xf32, #tpu.memory_space<vmem>>, vector<35x8xf32>
    tpu.vector_store %arg10[%c35_11, %c8_12], %17 {strides = array<i32>} : memref<70x72xf32, #tpu.memory_space<vmem>>, vector<35x8xf32>,
    %19 = vector.extract_strided_slice %10 {offsets = [2, 0], sizes = [35, 8], strides = [1, 1]} : vector<102x8xf32> to vector<35x8xf32>
    %c0_13 = arith.constant 0 : index
    %c16 = arith.constant 16 : index
    %20 = vector.load %arg10[%c0_13, %c16] : memref<70x72xf32, #tpu.memory_space<vmem>>, vector<35x8xf32>
    tpu.vector_store %arg10[%c0_13, %c16], %19 {strides = array<i32>} : memref<70x72xf32, #tpu.memory_space<vmem>>, vector<35x8xf32>,
    %21 = vector.extract_strided_slice %10 {offsets = [53, 0], sizes = [35, 8], strides = [1, 1]} : vector<102x8xf32> to vector<35x8xf32>
    %c35_14 = arith.constant 35 : index
    %c16_15 = arith.constant 16 : index
    %22 = vector.load %arg10[%c35_14, %c16_15] : memref<70x72xf32, #tpu.memory_space<vmem>>, vector<35x8xf32>
    tpu.vector_store %arg10[%c35_14, %c16_15], %21 {strides = array<i32>} : memref<70x72xf32, #tpu.memory_space<vmem>>, vector<35x8xf32>,
    %23 = vector.extract_strided_slice %10 {offsets = [7, 0], sizes = [35, 8], strides = [1, 1]} : vector<102x8xf32> to vector<35x8xf32>
    %c0_16 = arith.constant 0 : index
    %c24 = arith.constant 24 : index
    %24 = vector.load %arg10[%c0_16, %c24] : memref<70x72xf32, #tpu.memory_space<vmem>>, vector<35x8xf32>
    tpu.vector_store %arg10[%c0_16, %c24], %23 {strides = array<i32>} : memref<70x72xf32, #tpu.memory_space<vmem>>, vector<35x8xf32>,
    %25 = vector.extract_strided_slice %10 {offsets = [58, 0], sizes = [35, 8], strides = [1, 1]} : vector<102x8xf32> to vector<35x8xf32>
    %c35_17 = arith.constant 35 : index
    %c24_18 = arith.constant 24 : index
    %26 = vector.load %arg10[%c35_17, %c24_18] : memref<70x72xf32, #tpu.memory_space<vmem>>, vector<35x8xf32>
    tpu.vector_store %arg10[%c35_17, %c24_18], %25 {strides = array<i32>} : memref<70x72xf32, #tpu.memory_space<vmem>>, vector<35x8xf32>,
    %27 = vector.extract_strided_slice %10 {offsets = [8, 0], sizes = [35, 8], strides = [1, 1]} : vector<102x8xf32> to vector<35x8xf32>
    %c0_19 = arith.constant 0 : index
    %c32 = arith.constant 32 : index
    %28 = vector.load %arg10[%c0_19, %c32] : memref<70x72xf32, #tpu.memory_space<vmem>>, vector<35x8xf32>
    tpu.vector_store %arg10[%c0_19, %c32], %27 {strides = array<i32>} : memref<70x72xf32, #tpu.memory_space<vmem>>, vector<35x8xf32>,
    %29 = vector.extract_strided_slice %10 {offsets = [59, 0], sizes = [35, 8], strides = [1, 1]} : vector<102x8xf32> to vector<35x8xf32>
    %c35_20 = arith.constant 35 : index
    %c32_21 = arith.constant 32 : index
    %30 = vector.load %arg10[%c35_20, %c32_21] : memref<70x72xf32, #tpu.memory_space<vmem>>, vector<35x8xf32>
    tpu.vector_store %arg10[%c35_20, %c32_21], %29 {strides = array<i32>} : memref<70x72xf32, #tpu.memory_space<vmem>>, vector<35x8xf32>,
    %31 = vector.extract_strided_slice %10 {offsets = [9, 0], sizes = [35, 8], strides = [1, 1]} : vector<102x8xf32> to vector<35x8xf32>
    %c0_22 = arith.constant 0 : index
    %c40 = arith.constant 40 : index
    %32 = vector.load %arg10[%c0_22, %c40] : memref<70x72xf32, #tpu.memory_space<vmem>>, vector<35x8xf32>
    tpu.vector_store %arg10[%c0_22, %c40], %31 {strides = array<i32>} : memref<70x72xf32, #tpu.memory_space<vmem>>, vector<35x8xf32>,
    %33 = vector.extract_strided_slice %10 {offsets = [60, 0], sizes = [35, 8], strides = [1, 1]} : vector<102x8xf32> to vector<35x8xf32>
    %c35_23 = arith.constant 35 : index
    %c40_24 = arith.constant 40 : index
    %34 = vector.load %arg10[%c35_23, %c40_24] : memref<70x72xf32, #tpu.memory_space<vmem>>, vector<35x8xf32>
    tpu.vector_store %arg10[%c35_23, %c40_24], %33 {strides = array<i32>} : memref<70x72xf32, #tpu.memory_space<vmem>>, vector<35x8xf32>,
    %35 = vector.extract_strided_slice %10 {offsets = [14, 0], sizes = [35, 8], strides = [1, 1]} : vector<102x8xf32> to vector<35x8xf32>
    %c0_25 = arith.constant 0 : index
    %c48 = arith.constant 48 : index
    %36 = vector.load %arg10[%c0_25, %c48] : memref<70x72xf32, #tpu.memory_space<vmem>>, vector<35x8xf32>
    tpu.vector_store %arg10[%c0_25, %c48], %35 {strides = array<i32>} : memref<70x72xf32, #tpu.memory_space<vmem>>, vector<35x8xf32>,
    %37 = vector.extract_strided_slice %10 {offsets = [65, 0], sizes = [35, 8], strides = [1, 1]} : vector<102x8xf32> to vector<35x8xf32>
    %c35_26 = arith.constant 35 : index
    %c48_27 = arith.constant 48 : index
    %38 = vector.load %arg10[%c35_26, %c48_27] : memref<70x72xf32, #tpu.memory_space<vmem>>, vector<35x8xf32>
    tpu.vector_store %arg10[%c35_26, %c48_27], %37 {strides = array<i32>} : memref<70x72xf32, #tpu.memory_space<vmem>>, vector<35x8xf32>,
    %39 = vector.extract_strided_slice %10 {offsets = [15, 0], sizes = [35, 8], strides = [1, 1]} : vector<102x8xf32> to vector<35x8xf32>
    %c0_28 = arith.constant 0 : index
    %c56 = arith.constant 56 : index
    %40 = vector.load %arg10[%c0_28, %c56] : memref<70x72xf32, #tpu.memory_space<vmem>>, vector<35x8xf32>
    tpu.vector_store %arg10[%c0_28, %c56], %39 {strides = array<i32>} : memref<70x72xf32, #tpu.memory_space<vmem>>, vector<35x8xf32>,
    %41 = vector.extract_strided_slice %10 {offsets = [66, 0], sizes = [35, 8], strides = [1, 1]} : vector<102x8xf32> to vector<35x8xf32>
    %c35_29 = arith.constant 35 : index
    %c56_30 = arith.constant 56 : index
    %42 = vector.load %arg10[%c35_29, %c56_30] : memref<70x72xf32, #tpu.memory_space<vmem>>, vector<35x8xf32>
    tpu.vector_store %arg10[%c35_29, %c56_30], %41 {strides = array<i32>} : memref<70x72xf32, #tpu.memory_space<vmem>>, vector<35x8xf32>,
    %43 = vector.extract_strided_slice %10 {offsets = [16, 0], sizes = [35, 8], strides = [1, 1]} : vector<102x8xf32> to vector<35x8xf32>
    %c0_31 = arith.constant 0 : index
    %c64 = arith.constant 64 : index
    %44 = vector.load %arg10[%c0_31, %c64] : memref<70x72xf32, #tpu.memory_space<vmem>>, vector<35x8xf32>
    tpu.vector_store %arg10[%c0_31, %c64], %43 {strides = array<i32>} : memref<70x72xf32, #tpu.memory_space<vmem>>, vector<35x8xf32>,
    %45 = vector.extract_strided_slice %10 {offsets = [67, 0], sizes = [35, 8], strides = [1, 1]} : vector<102x8xf32> to vector<35x8xf32>
    %c35_32 = arith.constant 35 : index
    %c64_33 = arith.constant 64 : index
    %46 = vector.load %arg10[%c35_32, %c64_33] : memref<70x72xf32, #tpu.memory_space<vmem>>, vector<35x8xf32>
    tpu.vector_store %arg10[%c35_32, %c64_33], %45 {strides = array<i32>} : memref<70x72xf32, #tpu.memory_space<vmem>>, vector<35x8xf32>,
    %c0_34 = arith.constant 0 : index
    %c0_35 = arith.constant 0 : index
    %47 = vector.load %arg10[%c0_34, %c0_35] : memref<70x72xf32, #tpu.memory_space<vmem>>, vector<70x72xf32>
    %48 = arith.truncf %47 : vector<70x72xf32> to vector<70x72xbf16>
    %c0_36 = arith.constant 0 : index
    %c0_37 = arith.constant 0 : index
    %49 = vector.load %arg4[%c0_36, %c0_37] : memref<72x16xbf16, #tpu.memory_space<vmem>>, vector<72x16xbf16>
    %cst_38 = arith.constant dense<0.000000e+00> : vector<70x16xf32>
    %50 = tpu.matmul %48, %49, %cst_38 {dimension_numbers = #tpu.dot_dimension_numbers<[1], [0], [0], [1], [0, 0, 1, 1], [], []>} : vector<70x72xbf16>, vector<72x16xbf16>, vector<70x16xf32> -> vector<70x16xf32>
    %c0_39 = arith.constant 0 : index
    %c0_40 = arith.constant 0 : index
    %51 = vector.load %arg5[%c0_39, %c0_40] : memref<1x16xf32, #tpu.memory_space<vmem>>, vector<1x16xf32>
    %52 = vector.broadcast %51 : vector<1x16xf32> to vector<70x16xf32>
    %53 = arith.addf %50, %52 : vector<70x16xf32>
    %cst_41 = arith.constant 0.000000e+00 : f32
    %54 = vector.broadcast %cst_41 : f32 to vector<70x16xf32>
    %55 = arith.maximumf %53, %54 : vector<70x16xf32>
    %56 = vector.extract_strided_slice %55 {offsets = [0, 0], sizes = [5, 16], strides = [1, 1]} : vector<70x16xf32> to vector<5x16xf32>
    %c0_42 = arith.constant 0 : index
    %c0_43 = arith.constant 0 : index
    %57 = vector.load %arg11[%c0_42, %c0_43] : memref<25x16xf32, #tpu.memory_space<vmem>>, vector<5x16xf32>
    tpu.vector_store %arg11[%c0_42, %c0_43], %56 {strides = array<i32>} : memref<25x16xf32, #tpu.memory_space<vmem>>, vector<5x16xf32>,
    %58 = vector.extract_strided_slice %55 {offsets = [7, 0], sizes = [5, 16], strides = [1, 1]} : vector<70x16xf32> to vector<5x16xf32>
    %c5 = arith.constant 5 : index
    %c0_44 = arith.constant 0 : index
    %59 = vector.load %arg11[%c5, %c0_44] : memref<25x16xf32, #tpu.memory_space<vmem>>, vector<5x16xf32>
    tpu.vector_store %arg11[%c5, %c0_44], %58 {strides = array<i32>} : memref<25x16xf32, #tpu.memory_space<vmem>>, vector<5x16xf32>,
    %60 = vector.extract_strided_slice %55 {offsets = [14, 0], sizes = [5, 16], strides = [1, 1]} : vector<70x16xf32> to vector<5x16xf32>
    %c10 = arith.constant 10 : index
    %c0_45 = arith.constant 0 : index
    %61 = vector.load %arg11[%c10, %c0_45] : memref<25x16xf32, #tpu.memory_space<vmem>>, vector<5x16xf32>
    tpu.vector_store %arg11[%c10, %c0_45], %60 {strides = array<i32>} : memref<25x16xf32, #tpu.memory_space<vmem>>, vector<5x16xf32>,
    %62 = vector.extract_strided_slice %55 {offsets = [21, 0], sizes = [5, 16], strides = [1, 1]} : vector<70x16xf32> to vector<5x16xf32>
    %c15 = arith.constant 15 : index
    %c0_46 = arith.constant 0 : index
    %63 = vector.load %arg11[%c15, %c0_46] : memref<25x16xf32, #tpu.memory_space<vmem>>, vector<5x16xf32>
    tpu.vector_store %arg11[%c15, %c0_46], %62 {strides = array<i32>} : memref<25x16xf32, #tpu.memory_space<vmem>>, vector<5x16xf32>,
    %64 = vector.extract_strided_slice %55 {offsets = [28, 0], sizes = [5, 16], strides = [1, 1]} : vector<70x16xf32> to vector<5x16xf32>
    %c20 = arith.constant 20 : index
    %c0_47 = arith.constant 0 : index
    %65 = vector.load %arg11[%c20, %c0_47] : memref<25x16xf32, #tpu.memory_space<vmem>>, vector<5x16xf32>
    tpu.vector_store %arg11[%c20, %c0_47], %64 {strides = array<i32>} : memref<25x16xf32, #tpu.memory_space<vmem>>, vector<5x16xf32>,
    %c0_48 = arith.constant 0 : index
    %c0_49 = arith.constant 0 : index
    %66 = vector.load %arg11[%c0_48, %c0_49] : memref<25x16xf32, #tpu.memory_space<vmem>>, vector<25x16xf32>
    %67 = tpu.transpose %66, [1, 0] : vector<25x16xf32> -> vector<16x25xf32>
    %68 = vector.extract_strided_slice %67 {offsets = [0, 0], sizes = [1, 25], strides = [1, 1]} : vector<16x25xf32> to vector<1x25xf32>
    %c0_50 = arith.constant 0 : index
    %c0_51 = arith.constant 0 : index
    %69 = vector.load %arg12[%c0_50, %c0_51] : memref<2x400xf32, #tpu.memory_space<vmem>>, vector<1x25xf32>
    tpu.vector_store %arg12[%c0_50, %c0_51], %68 {strides = array<i32>} : memref<2x400xf32, #tpu.memory_space<vmem>>, vector<1x25xf32>,
    %70 = vector.extract_strided_slice %67 {offsets = [1, 0], sizes = [1, 25], strides = [1, 1]} : vector<16x25xf32> to vector<1x25xf32>
    %c0_52 = arith.constant 0 : index
    %c25 = arith.constant 25 : index
    %71 = vector.load %arg12[%c0_52, %c25] : memref<2x400xf32, #tpu.memory_space<vmem>>, vector<1x25xf32>
    tpu.vector_store %arg12[%c0_52, %c25], %70 {strides = array<i32>} : memref<2x400xf32, #tpu.memory_space<vmem>>, vector<1x25xf32>,
    %72 = vector.extract_strided_slice %67 {offsets = [2, 0], sizes = [1, 25], strides = [1, 1]} : vector<16x25xf32> to vector<1x25xf32>
    %c0_53 = arith.constant 0 : index
    %c50 = arith.constant 50 : index
    %73 = vector.load %arg12[%c0_53, %c50] : memref<2x400xf32, #tpu.memory_space<vmem>>, vector<1x25xf32>
    tpu.vector_store %arg12[%c0_53, %c50], %72 {strides = array<i32>} : memref<2x400xf32, #tpu.memory_space<vmem>>, vector<1x25xf32>,
    %74 = vector.extract_strided_slice %67 {offsets = [3, 0], sizes = [1, 25], strides = [1, 1]} : vector<16x25xf32> to vector<1x25xf32>
    %c0_54 = arith.constant 0 : index
    %c75 = arith.constant 75 : index
    %75 = vector.load %arg12[%c0_54, %c75] : memref<2x400xf32, #tpu.memory_space<vmem>>, vector<1x25xf32>
    tpu.vector_store %arg12[%c0_54, %c75], %74 {strides = array<i32>} : memref<2x400xf32, #tpu.memory_space<vmem>>, vector<1x25xf32>,
    %76 = vector.extract_strided_slice %67 {offsets = [4, 0], sizes = [1, 25], strides = [1, 1]} : vector<16x25xf32> to vector<1x25xf32>
    %c0_55 = arith.constant 0 : index
    %c100 = arith.constant 100 : index
    %77 = vector.load %arg12[%c0_55, %c100] : memref<2x400xf32, #tpu.memory_space<vmem>>, vector<1x25xf32>
    tpu.vector_store %arg12[%c0_55, %c100], %76 {strides = array<i32>} : memref<2x400xf32, #tpu.memory_space<vmem>>, vector<1x25xf32>,
    %78 = vector.extract_strided_slice %67 {offsets = [5, 0], sizes = [1, 25], strides = [1, 1]} : vector<16x25xf32> to vector<1x25xf32>
    %c0_56 = arith.constant 0 : index
    %c125 = arith.constant 125 : index
    %79 = vector.load %arg12[%c0_56, %c125] : memref<2x400xf32, #tpu.memory_space<vmem>>, vector<1x25xf32>
    tpu.vector_store %arg12[%c0_56, %c125], %78 {strides = array<i32>} : memref<2x400xf32, #tpu.memory_space<vmem>>, vector<1x25xf32>,
    %80 = vector.extract_strided_slice %67 {offsets = [6, 0], sizes = [1, 25], strides = [1, 1]} : vector<16x25xf32> to vector<1x25xf32>
    %c0_57 = arith.constant 0 : index
    %c150 = arith.constant 150 : index
    %81 = vector.load %arg12[%c0_57, %c150] : memref<2x400xf32, #tpu.memory_space<vmem>>, vector<1x25xf32>
    tpu.vector_store %arg12[%c0_57, %c150], %80 {strides = array<i32>} : memref<2x400xf32, #tpu.memory_space<vmem>>, vector<1x25xf32>,
    %82 = vector.extract_strided_slice %67 {offsets = [7, 0], sizes = [1, 25], strides = [1, 1]} : vector<16x25xf32> to vector<1x25xf32>
    %c0_58 = arith.constant 0 : index
    %c175 = arith.constant 175 : index
    %83 = vector.load %arg12[%c0_58, %c175] : memref<2x400xf32, #tpu.memory_space<vmem>>, vector<1x25xf32>
    tpu.vector_store %arg12[%c0_58, %c175], %82 {strides = array<i32>} : memref<2x400xf32, #tpu.memory_space<vmem>>, vector<1x25xf32>,
    %84 = vector.extract_strided_slice %67 {offsets = [8, 0], sizes = [1, 25], strides = [1, 1]} : vector<16x25xf32> to vector<1x25xf32>
    %c0_59 = arith.constant 0 : index
    %c200 = arith.constant 200 : index
    %85 = vector.load %arg12[%c0_59, %c200] : memref<2x400xf32, #tpu.memory_space<vmem>>, vector<1x25xf32>
    tpu.vector_store %arg12[%c0_59, %c200], %84 {strides = array<i32>} : memref<2x400xf32, #tpu.memory_space<vmem>>, vector<1x25xf32>,
    %86 = vector.extract_strided_slice %67 {offsets = [9, 0], sizes = [1, 25], strides = [1, 1]} : vector<16x25xf32> to vector<1x25xf32>
    %c0_60 = arith.constant 0 : index
    %c225 = arith.constant 225 : index
    %87 = vector.load %arg12[%c0_60, %c225] : memref<2x400xf32, #tpu.memory_space<vmem>>, vector<1x25xf32>
    tpu.vector_store %arg12[%c0_60, %c225], %86 {strides = array<i32>} : memref<2x400xf32, #tpu.memory_space<vmem>>, vector<1x25xf32>,
    %88 = vector.extract_strided_slice %67 {offsets = [10, 0], sizes = [1, 25], strides = [1, 1]} : vector<16x25xf32> to vector<1x25xf32>
    %c0_61 = arith.constant 0 : index
    %c250 = arith.constant 250 : index
    %89 = vector.load %arg12[%c0_61, %c250] : memref<2x400xf32, #tpu.memory_space<vmem>>, vector<1x25xf32>
    tpu.vector_store %arg12[%c0_61, %c250], %88 {strides = array<i32>} : memref<2x400xf32, #tpu.memory_space<vmem>>, vector<1x25xf32>,
    %90 = vector.extract_strided_slice %67 {offsets = [11, 0], sizes = [1, 25], strides = [1, 1]} : vector<16x25xf32> to vector<1x25xf32>
    %c0_62 = arith.constant 0 : index
    %c275 = arith.constant 275 : index
    %91 = vector.load %arg12[%c0_62, %c275] : memref<2x400xf32, #tpu.memory_space<vmem>>, vector<1x25xf32>
    tpu.vector_store %arg12[%c0_62, %c275], %90 {strides = array<i32>} : memref<2x400xf32, #tpu.memory_space<vmem>>, vector<1x25xf32>,
    %92 = vector.extract_strided_slice %67 {offsets = [12, 0], sizes = [1, 25], strides = [1, 1]} : vector<16x25xf32> to vector<1x25xf32>
    %c0_63 = arith.constant 0 : index
    %c300 = arith.constant 300 : index
    %93 = vector.load %arg12[%c0_63, %c300] : memref<2x400xf32, #tpu.memory_space<vmem>>, vector<1x25xf32>
    tpu.vector_store %arg12[%c0_63, %c300], %92 {strides = array<i32>} : memref<2x400xf32, #tpu.memory_space<vmem>>, vector<1x25xf32>,
    %94 = vector.extract_strided_slice %67 {offsets = [13, 0], sizes = [1, 25], strides = [1, 1]} : vector<16x25xf32> to vector<1x25xf32>
    %c0_64 = arith.constant 0 : index
    %c325 = arith.constant 325 : index
    %95 = vector.load %arg12[%c0_64, %c325] : memref<2x400xf32, #tpu.memory_space<vmem>>, vector<1x25xf32>
    tpu.vector_store %arg12[%c0_64, %c325], %94 {strides = array<i32>} : memref<2x400xf32, #tpu.memory_space<vmem>>, vector<1x25xf32>,
    %96 = vector.extract_strided_slice %67 {offsets = [14, 0], sizes = [1, 25], strides = [1, 1]} : vector<16x25xf32> to vector<1x25xf32>
    %c0_65 = arith.constant 0 : index
    %c350 = arith.constant 350 : index
    %97 = vector.load %arg12[%c0_65, %c350] : memref<2x400xf32, #tpu.memory_space<vmem>>, vector<1x25xf32>
    tpu.vector_store %arg12[%c0_65, %c350], %96 {strides = array<i32>} : memref<2x400xf32, #tpu.memory_space<vmem>>, vector<1x25xf32>,
    %98 = vector.extract_strided_slice %67 {offsets = [15, 0], sizes = [1, 25], strides = [1, 1]} : vector<16x25xf32> to vector<1x25xf32>
    %c0_66 = arith.constant 0 : index
    %c375 = arith.constant 375 : index
    %99 = vector.load %arg12[%c0_66, %c375] : memref<2x400xf32, #tpu.memory_space<vmem>>, vector<1x25xf32>
    tpu.vector_store %arg12[%c0_66, %c375], %98 {strides = array<i32>} : memref<2x400xf32, #tpu.memory_space<vmem>>, vector<1x25xf32>,
    %100 = vector.extract_strided_slice %55 {offsets = [35, 0], sizes = [5, 16], strides = [1, 1]} : vector<70x16xf32> to vector<5x16xf32>
    %c0_67 = arith.constant 0 : index
    %c0_68 = arith.constant 0 : index
    %101 = vector.load %arg11[%c0_67, %c0_68] : memref<25x16xf32, #tpu.memory_space<vmem>>, vector<5x16xf32>
    tpu.vector_store %arg11[%c0_67, %c0_68], %100 {strides = array<i32>} : memref<25x16xf32, #tpu.memory_space<vmem>>, vector<5x16xf32>,
    %102 = vector.extract_strided_slice %55 {offsets = [42, 0], sizes = [5, 16], strides = [1, 1]} : vector<70x16xf32> to vector<5x16xf32>
    %c5_69 = arith.constant 5 : index
    %c0_70 = arith.constant 0 : index
    %103 = vector.load %arg11[%c5_69, %c0_70] : memref<25x16xf32, #tpu.memory_space<vmem>>, vector<5x16xf32>
    tpu.vector_store %arg11[%c5_69, %c0_70], %102 {strides = array<i32>} : memref<25x16xf32, #tpu.memory_space<vmem>>, vector<5x16xf32>,
    %104 = vector.extract_strided_slice %55 {offsets = [49, 0], sizes = [5, 16], strides = [1, 1]} : vector<70x16xf32> to vector<5x16xf32>
    %c10_71 = arith.constant 10 : index
    %c0_72 = arith.constant 0 : index
    %105 = vector.load %arg11[%c10_71, %c0_72] : memref<25x16xf32, #tpu.memory_space<vmem>>, vector<5x16xf32>
    tpu.vector_store %arg11[%c10_71, %c0_72], %104 {strides = array<i32>} : memref<25x16xf32, #tpu.memory_space<vmem>>, vector<5x16xf32>,
    %106 = vector.extract_strided_slice %55 {offsets = [56, 0], sizes = [5, 16], strides = [1, 1]} : vector<70x16xf32> to vector<5x16xf32>
    %c15_73 = arith.constant 15 : index
    %c0_74 = arith.constant 0 : index
    %107 = vector.load %arg11[%c15_73, %c0_74] : memref<25x16xf32, #tpu.memory_space<vmem>>, vector<5x16xf32>
    tpu.vector_store %arg11[%c15_73, %c0_74], %106 {strides = array<i32>} : memref<25x16xf32, #tpu.memory_space<vmem>>, vector<5x16xf32>,
    %108 = vector.extract_strided_slice %55 {offsets = [63, 0], sizes = [5, 16], strides = [1, 1]} : vector<70x16xf32> to vector<5x16xf32>
    %c20_75 = arith.constant 20 : index
    %c0_76 = arith.constant 0 : index
    %109 = vector.load %arg11[%c20_75, %c0_76] : memref<25x16xf32, #tpu.memory_space<vmem>>, vector<5x16xf32>
    tpu.vector_store %arg11[%c20_75, %c0_76], %108 {strides = array<i32>} : memref<25x16xf32, #tpu.memory_space<vmem>>, vector<5x16xf32>,
    %c0_77 = arith.constant 0 : index
    %c0_78 = arith.constant 0 : index
    %110 = vector.load %arg11[%c0_77, %c0_78] : memref<25x16xf32, #tpu.memory_space<vmem>>, vector<25x16xf32>
    %111 = tpu.transpose %110, [1, 0] : vector<25x16xf32> -> vector<16x25xf32>
    %112 = vector.extract_strided_slice %111 {offsets = [0, 0], sizes = [1, 25], strides = [1, 1]} : vector<16x25xf32> to vector<1x25xf32>
    %c1 = arith.constant 1 : index
    %c0_79 = arith.constant 0 : index
    %113 = vector.load %arg12[%c1, %c0_79] : memref<2x400xf32, #tpu.memory_space<vmem>>, vector<1x25xf32>
    tpu.vector_store %arg12[%c1, %c0_79], %112 {strides = array<i32>} : memref<2x400xf32, #tpu.memory_space<vmem>>, vector<1x25xf32>,
    %114 = vector.extract_strided_slice %111 {offsets = [1, 0], sizes = [1, 25], strides = [1, 1]} : vector<16x25xf32> to vector<1x25xf32>
    %c1_80 = arith.constant 1 : index
    %c25_81 = arith.constant 25 : index
    %115 = vector.load %arg12[%c1_80, %c25_81] : memref<2x400xf32, #tpu.memory_space<vmem>>, vector<1x25xf32>
    tpu.vector_store %arg12[%c1_80, %c25_81], %114 {strides = array<i32>} : memref<2x400xf32, #tpu.memory_space<vmem>>, vector<1x25xf32>,
    %116 = vector.extract_strided_slice %111 {offsets = [2, 0], sizes = [1, 25], strides = [1, 1]} : vector<16x25xf32> to vector<1x25xf32>
    %c1_82 = arith.constant 1 : index
    %c50_83 = arith.constant 50 : index
    %117 = vector.load %arg12[%c1_82, %c50_83] : memref<2x400xf32, #tpu.memory_space<vmem>>, vector<1x25xf32>
    tpu.vector_store %arg12[%c1_82, %c50_83], %116 {strides = array<i32>} : memref<2x400xf32, #tpu.memory_space<vmem>>, vector<1x25xf32>,
    %118 = vector.extract_strided_slice %111 {offsets = [3, 0], sizes = [1, 25], strides = [1, 1]} : vector<16x25xf32> to vector<1x25xf32>
    %c1_84 = arith.constant 1 : index
    %c75_85 = arith.constant 75 : index
    %119 = vector.load %arg12[%c1_84, %c75_85] : memref<2x400xf32, #tpu.memory_space<vmem>>, vector<1x25xf32>
    tpu.vector_store %arg12[%c1_84, %c75_85], %118 {strides = array<i32>} : memref<2x400xf32, #tpu.memory_space<vmem>>, vector<1x25xf32>,
    %120 = vector.extract_strided_slice %111 {offsets = [4, 0], sizes = [1, 25], strides = [1, 1]} : vector<16x25xf32> to vector<1x25xf32>
    %c1_86 = arith.constant 1 : index
    %c100_87 = arith.constant 100 : index
    %121 = vector.load %arg12[%c1_86, %c100_87] : memref<2x400xf32, #tpu.memory_space<vmem>>, vector<1x25xf32>
    tpu.vector_store %arg12[%c1_86, %c100_87], %120 {strides = array<i32>} : memref<2x400xf32, #tpu.memory_space<vmem>>, vector<1x25xf32>,
    %122 = vector.extract_strided_slice %111 {offsets = [5, 0], sizes = [1, 25], strides = [1, 1]} : vector<16x25xf32> to vector<1x25xf32>
    %c1_88 = arith.constant 1 : index
    %c125_89 = arith.constant 125 : index
    %123 = vector.load %arg12[%c1_88, %c125_89] : memref<2x400xf32, #tpu.memory_space<vmem>>, vector<1x25xf32>
    tpu.vector_store %arg12[%c1_88, %c125_89], %122 {strides = array<i32>} : memref<2x400xf32, #tpu.memory_space<vmem>>, vector<1x25xf32>,
    %124 = vector.extract_strided_slice %111 {offsets = [6, 0], sizes = [1, 25], strides = [1, 1]} : vector<16x25xf32> to vector<1x25xf32>
    %c1_90 = arith.constant 1 : index
    %c150_91 = arith.constant 150 : index
    %125 = vector.load %arg12[%c1_90, %c150_91] : memref<2x400xf32, #tpu.memory_space<vmem>>, vector<1x25xf32>
    tpu.vector_store %arg12[%c1_90, %c150_91], %124 {strides = array<i32>} : memref<2x400xf32, #tpu.memory_space<vmem>>, vector<1x25xf32>,
    %126 = vector.extract_strided_slice %111 {offsets = [7, 0], sizes = [1, 25], strides = [1, 1]} : vector<16x25xf32> to vector<1x25xf32>
    %c1_92 = arith.constant 1 : index
    %c175_93 = arith.constant 175 : index
    %127 = vector.load %arg12[%c1_92, %c175_93] : memref<2x400xf32, #tpu.memory_space<vmem>>, vector<1x25xf32>
    tpu.vector_store %arg12[%c1_92, %c175_93], %126 {strides = array<i32>} : memref<2x400xf32, #tpu.memory_space<vmem>>, vector<1x25xf32>,
    %128 = vector.extract_strided_slice %111 {offsets = [8, 0], sizes = [1, 25], strides = [1, 1]} : vector<16x25xf32> to vector<1x25xf32>
    %c1_94 = arith.constant 1 : index
    %c200_95 = arith.constant 200 : index
    %129 = vector.load %arg12[%c1_94, %c200_95] : memref<2x400xf32, #tpu.memory_space<vmem>>, vector<1x25xf32>
    tpu.vector_store %arg12[%c1_94, %c200_95], %128 {strides = array<i32>} : memref<2x400xf32, #tpu.memory_space<vmem>>, vector<1x25xf32>,
    %130 = vector.extract_strided_slice %111 {offsets = [9, 0], sizes = [1, 25], strides = [1, 1]} : vector<16x25xf32> to vector<1x25xf32>
    %c1_96 = arith.constant 1 : index
    %c225_97 = arith.constant 225 : index
    %131 = vector.load %arg12[%c1_96, %c225_97] : memref<2x400xf32, #tpu.memory_space<vmem>>, vector<1x25xf32>
    tpu.vector_store %arg12[%c1_96, %c225_97], %130 {strides = array<i32>} : memref<2x400xf32, #tpu.memory_space<vmem>>, vector<1x25xf32>,
    %132 = vector.extract_strided_slice %111 {offsets = [10, 0], sizes = [1, 25], strides = [1, 1]} : vector<16x25xf32> to vector<1x25xf32>
    %c1_98 = arith.constant 1 : index
    %c250_99 = arith.constant 250 : index
    %133 = vector.load %arg12[%c1_98, %c250_99] : memref<2x400xf32, #tpu.memory_space<vmem>>, vector<1x25xf32>
    tpu.vector_store %arg12[%c1_98, %c250_99], %132 {strides = array<i32>} : memref<2x400xf32, #tpu.memory_space<vmem>>, vector<1x25xf32>,
    %134 = vector.extract_strided_slice %111 {offsets = [11, 0], sizes = [1, 25], strides = [1, 1]} : vector<16x25xf32> to vector<1x25xf32>
    %c1_100 = arith.constant 1 : index
    %c275_101 = arith.constant 275 : index
    %135 = vector.load %arg12[%c1_100, %c275_101] : memref<2x400xf32, #tpu.memory_space<vmem>>, vector<1x25xf32>
    tpu.vector_store %arg12[%c1_100, %c275_101], %134 {strides = array<i32>} : memref<2x400xf32, #tpu.memory_space<vmem>>, vector<1x25xf32>,
    %136 = vector.extract_strided_slice %111 {offsets = [12, 0], sizes = [1, 25], strides = [1, 1]} : vector<16x25xf32> to vector<1x25xf32>
    %c1_102 = arith.constant 1 : index
    %c300_103 = arith.constant 300 : index
    %137 = vector.load %arg12[%c1_102, %c300_103] : memref<2x400xf32, #tpu.memory_space<vmem>>, vector<1x25xf32>
    tpu.vector_store %arg12[%c1_102, %c300_103], %136 {strides = array<i32>} : memref<2x400xf32, #tpu.memory_space<vmem>>, vector<1x25xf32>,
    %138 = vector.extract_strided_slice %111 {offsets = [13, 0], sizes = [1, 25], strides = [1, 1]} : vector<16x25xf32> to vector<1x25xf32>
    %c1_104 = arith.constant 1 : index
    %c325_105 = arith.constant 325 : index
    %139 = vector.load %arg12[%c1_104, %c325_105] : memref<2x400xf32, #tpu.memory_space<vmem>>, vector<1x25xf32>
    tpu.vector_store %arg12[%c1_104, %c325_105], %138 {strides = array<i32>} : memref<2x400xf32, #tpu.memory_space<vmem>>, vector<1x25xf32>,
    %140 = vector.extract_strided_slice %111 {offsets = [14, 0], sizes = [1, 25], strides = [1, 1]} : vector<16x25xf32> to vector<1x25xf32>
    %c1_106 = arith.constant 1 : index
    %c350_107 = arith.constant 350 : index
    %141 = vector.load %arg12[%c1_106, %c350_107] : memref<2x400xf32, #tpu.memory_space<vmem>>, vector<1x25xf32>
    tpu.vector_store %arg12[%c1_106, %c350_107], %140 {strides = array<i32>} : memref<2x400xf32, #tpu.memory_space<vmem>>, vector<1x25xf32>,
    %142 = vector.extract_strided_slice %111 {offsets = [15, 0], sizes = [1, 25], strides = [1, 1]} : vector<16x25xf32> to vector<1x25xf32>
    %c1_108 = arith.constant 1 : index
    %c375_109 = arith.constant 375 : index
    %143 = vector.load %arg12[%c1_108, %c375_109] : memref<2x400xf32, #tpu.memory_space<vmem>>, vector<1x25xf32>
    tpu.vector_store %arg12[%c1_108, %c375_109], %142 {strides = array<i32>} : memref<2x400xf32, #tpu.memory_space<vmem>>, vector<1x25xf32>,
    %c0_110 = arith.constant 0 : index
    %c0_111 = arith.constant 0 : index
    %144 = vector.load %arg12[%c0_110, %c0_111] : memref<2x400xf32, #tpu.memory_space<vmem>>, vector<2x400xf32>
    %c0_112 = arith.constant 0 : index
    %c0_113 = arith.constant 0 : index
    %c0_114 = arith.constant 0 : index
    %145 = vector.load %arg8[%c0_112, %c0_113, %c0_114] : memref<1x2x400xf32, #tpu.memory_space<vmem>>, vector<1x2x400xf32>
    %146 = vector.shape_cast %145 : vector<1x2x400xf32> to vector<2x400xf32>
    %147 = vector.shape_cast %144 : vector<2x400xf32> to vector<1x2x400xf32>
    tpu.vector_store %arg8[%c0_112, %c0_113, %c0_114], %147 {strides = array<i32>} : memref<1x2x400xf32, #tpu.memory_space<vmem>>, vector<1x2x400xf32>,
    %148 = arith.truncf %144 : vector<2x400xf32> to vector<2x400xbf16>
    %c0_115 = arith.constant 0 : index
    %c0_116 = arith.constant 0 : index
    %149 = vector.load %arg6[%c0_115, %c0_116] : memref<400x128xbf16, #tpu.memory_space<vmem>>, vector<400x128xbf16>
    %cst_117 = arith.constant dense<0.000000e+00> : vector<2x128xf32>
    %150 = tpu.matmul %148, %149, %cst_117 {dimension_numbers = #tpu.dot_dimension_numbers<[1], [0], [0], [1], [0, 0, 1, 1], [], []>} : vector<2x400xbf16>, vector<400x128xbf16>, vector<2x128xf32> -> vector<2x128xf32>
    %c0_118 = arith.constant 0 : index
    %c0_119 = arith.constant 0 : index
    %151 = vector.load %arg7[%c0_118, %c0_119] : memref<1x128xf32, #tpu.memory_space<vmem>>, vector<1x128xf32>
    %152 = vector.broadcast %151 : vector<1x128xf32> to vector<2x128xf32>
    %153 = arith.addf %150, %152 : vector<2x128xf32>
    %c0_120 = arith.constant 0 : index
    %c0_121 = arith.constant 0 : index
    %c0_122 = arith.constant 0 : index
    %154 = vector.load %arg9[%c0_120, %c0_121, %c0_122] : memref<1x2x128xf32, #tpu.memory_space<vmem>>, vector<1x2x128xf32>
    %155 = vector.shape_cast %154 : vector<1x2x128xf32> to vector<2x128xf32>
    %156 = vector.shape_cast %153 : vector<2x128xf32> to vector<1x2x128xf32>
    tpu.vector_store %arg9[%c0_120, %c0_121, %c0_122], %156 {strides = array<i32>} : memref<1x2x128xf32, #tpu.memory_space<vmem>>, vector<1x2x128xf32>,
    return
  }
  func.func @transform_0(%arg0: i32) -> (i32, i32, i32) {
    %c0_i32 = arith.constant 0 : i32
    %c0_i32_0 = arith.constant 0 : i32
    %c0_i32_1 = arith.constant 0 : i32
    return %arg0, %c0_i32, %c0_i32_0 : i32, i32, i32
  }
  func.func @transform_1(%arg0: i32) -> (i32, i32) {
    %c0_i32 = arith.constant 0 : i32
    %c0_i32_0 = arith.constant 0 : i32
    %c0_i32_1 = arith.constant 0 : i32
    return %c0_i32, %c0_i32_0 : i32, i32
  }
  func.func @transform_2(%arg0: i32) -> (i32, i32) {
    %c0_i32 = arith.constant 0 : i32
    %c0_i32_0 = arith.constant 0 : i32
    %c0_i32_1 = arith.constant 0 : i32
    return %c0_i32, %c0_i32_0 : i32, i32
  }
  func.func @transform_3(%arg0: i32) -> (i32, i32) {
    %c0_i32 = arith.constant 0 : i32
    %c0_i32_0 = arith.constant 0 : i32
    %c0_i32_1 = arith.constant 0 : i32
    return %c0_i32, %c0_i32_0 : i32, i32
  }
  func.func @transform_4(%arg0: i32) -> (i32, i32) {
    %c0_i32 = arith.constant 0 : i32
    %c0_i32_0 = arith.constant 0 : i32
    %c0_i32_1 = arith.constant 0 : i32
    return %c0_i32, %c0_i32_0 : i32, i32
  }
  func.func @transform_5(%arg0: i32) -> (i32, i32) {
    %c0_i32 = arith.constant 0 : i32
    %c0_i32_0 = arith.constant 0 : i32
    %c0_i32_1 = arith.constant 0 : i32
    return %c0_i32, %c0_i32_0 : i32, i32
  }
  func.func @transform_6(%arg0: i32) -> (i32, i32) {
    %c0_i32 = arith.constant 0 : i32
    %c0_i32_0 = arith.constant 0 : i32
    %c0_i32_1 = arith.constant 0 : i32
    return %c0_i32, %c0_i32_0 : i32, i32
  }
  func.func @transform_7(%arg0: i32) -> (i32, i32, i32) {
    %c0_i32 = arith.constant 0 : i32
    %c0_i32_0 = arith.constant 0 : i32
    %c0_i32_1 = arith.constant 0 : i32
    return %arg0, %c0_i32, %c0_i32_0 : i32, i32, i32
  }
  func.func @transform_8(%arg0: i32) -> (i32, i32, i32) {
    %c0_i32 = arith.constant 0 : i32
    %c0_i32_0 = arith.constant 0 : i32
    %c0_i32_1 = arith.constant 0 : i32
    return %arg0, %c0_i32, %c0_i32_0 : i32, i32, i32
  }
}

</mosaic_0001>

<llo_original>
// kernel: tpu_custom_call.1
$region0: #{tpu_custom_call.1}
  #allocation0 [shape = 'u32[]', space=smem, size = 0x4, offset = 0x4, fixed_abs, tag = 'smem constant byte address 0x4 - core index']
  #allocation1 [shape = 'u32[144,128]{1,0:T(1,128)}', space=vmem, size = 0x12000, scoped, tag = 'internal scratch']
  #allocation2 [shape = 'f32[70,72]{1,0:T(8,128)}', space=vmem, size = 0x9000, scoped, tag = 'scratch operand']
  #allocation3 [shape = 'f32[25,16]{1,0:T(8,128)}', space=vmem, size = 0x4000, scoped, tag = 'scratch operand']
  #allocation4 [shape = 'f32[2,400]{1,0:T(2,128)}', space=vmem, size = 0x1000, scoped, tag = 'scratch operand']
  %s0 = inlined_call_operand.vmem [shape: s8[2,102,36], index: 0, kind: input, shape index: {}]
  %s1 = inlined_call_operand.vmem [shape: bf16[36,8], index: 1, kind: input, shape index: {}]
  %s2 = inlined_call_operand.vmem [shape: f32[1,8], index: 2, kind: input, shape index: {}]
  %s3 = inlined_call_operand.vmem [shape: bf16[72,16], index: 3, kind: input, shape index: {}]
  %s4 = inlined_call_operand.vmem [shape: f32[1,16], index: 4, kind: input, shape index: {}]
  %s5 = inlined_call_operand.hbm [shape: bf16[400,128], index: 5, kind: input, shape index: {}]
  %s6 = inlined_call_operand.vmem [shape: f32[1,128], index: 6, kind: input, shape index: {}]
  %s7 = inlined_call_operand.hbm [shape: f32[2,2,400], index: 7, kind: output, shape index: {0}]
  %s8 = inlined_call_operand.hbm [shape: f32[2,2,128], index: 8, kind: output, shape index: {1}]
  %9 = xla_tuple %s7, %s8
  %s10 = sld [smem:[#allocation0]]
  $region73: #{tpu_custom_call.1} parent=0
    _
  %s12 = ssub.s32 1, %s10
  %s13 = scalar_select 0, %s12, %s10
  $region1: #{tpu_custom_call.1} parent=0
    #allocation5 [shape = 'u8[102400]{0}', space=vmem, size = 0x19000, scoped, tag = 'input window, operand 5, single buffered']
    #allocation6 [shape = 's32[2]{0}', space=sflag, size = 0x8, scoped, tag = 'scoped memory for tpu_custom_call.1']
    #allocation7 [shape = 's32[2]{0}', space=sflag, size = 0x8, scoped, tag = 'scoped memory for tpu_custom_call.1']
    #allocation8 [shape = 'u8[8192]{0}', space=vmem, size = 0x2000, scoped, tag = 'output window, operand 0']
    #allocation9 [shape = 'u8[2048]{0}', space=vmem, size = 0x800, scoped, tag = 'output window, operand 1']
    #allocation10 [shape = 's32[2]{0}', space=sflag, size = 0x8, scoped, tag = 'scoped memory for tpu_custom_call.1']
    %14 = vsyncpa [#allocation6], 0
    %15 = vsyncpa [#allocation7], 0
    %s16 = scalar_lea.sflag [#allocation7], 1
    %17 = vsyncpa %s16, 0
    %18 = vsyncpa [#allocation10], 0
    %s19 = scalar_lea.sflag [#allocation10], 1
    %20 = vsyncpa %s19, 0
    loop: start=0, step=1, limit=4
    $region2: #{tpu_custom_call.1} parent=1 // loop_pre_header
      _
    $region3: #{tpu_custom_call.1} parent=1 // loop_header
      %s22 = sphi 0, %s26
      %p23 = scmp.ge.s32.totalorder %s22, 4
      %s32 = sphi 0, %s34
      %s35 = sphi 0, %s32
      %s36 = sphi 0, %s35
      %s52 = sphi 0, %s36
      %s56 = sphi 0, %s56
      %s58 = sphi 0, %s56
      %s59 = sphi 0, %s58
      %s73 = sphi 0, %s59
      %s77 = sphi 0, %s77
      %s79 = sphi 0, %s77
      %s80 = sphi 0, %s79
      %s94 = sphi 0, %s80
      %s98 = sphi 0, %s98
      %s100 = sphi 0, %s98
      %s101 = sphi 0, %s100
      %s115 = sphi 0, %s101
      %s119 = sphi 0, %s119
      %s121 = sphi 0, %s119
      %s122 = sphi 0, %s121
      %s136 = sphi 0, %s122
      %s140 = sphi 0, %s140
      %s142 = sphi 0, %s140
      %s143 = sphi 0, %s142
      %s157 = sphi 0, %s143
      %s161 = sphi 0, %s161
      %s163 = sphi 0, %s161
      %s164 = sphi 0, %s163
      %s178 = sphi 0, %s164
      %s184 = sphi 0, %s186
      %s187 = sphi 0, %s184
      %s188 = sphi 0, %s187
      %s204 = sphi 0, %s188
      %s210 = sphi 0, %s212
      %s213 = sphi 0, %s210
      %s214 = sphi 0, %s213
      %s230 = sphi 0, %s214
    $region4: #{tpu_custom_call.1} parent=1 // loop_header_branch
      %25 = sbr.rel (%p23) target = $region8
    $region5: #{tpu_custom_call.1} parent=1 // loop_body
      %s27 = ssub.s32 %s22, 1
      %s28 = ssub.s32 %s22, 2
      %s29 = sadd.s32 %s22, 1
      %s30 = ssub.s32 %s22, %s29
      %p31 = scmp.eq.s32.totalorder %s30, 0
      %s33 = sadd.s32 %s32, 1
      %s34 = scalar_select %p31, %s32, %s33
      %p37 = pneg %p31
      %p38 = scmp.eq.s32.totalorder %s22, 1
      %p39 = por %p37, %p38
      %p40 = scmp.ne.s32.totalorder %s32, %s35
      %p41 = scmp.eq.s32.totalorder %s22, 0
      %p42 = por %p40, %p41
      %p43 = scmp.ne.s32.totalorder %s32, %s35
      %p44 = scmp.eq.s32.totalorder %s27, 1
      %p45 = por %p43, %p44
      %p46 = scmp.ne.s32.totalorder %s35, %s36
      %p47 = scmp.eq.s32.totalorder %s27, 0
      %p48 = por %p46, %p47
      %p49 = scmp.ne.s32.totalorder %s35, %s36
      %p50 = scmp.eq.s32.totalorder %s28, 1
      %p51 = por %p49, %p50
      %p53 = scmp.ne.s32.totalorder %s36, %s52
      %p54 = scmp.eq.s32.totalorder %s28, 0
      %p55 = por %p53, %p54
      %s57 = sadd.s32 %s56, 1
      %p60 = scmp.eq.s32.totalorder %s22, 1
      %p61 = scmp.ne.s32.totalorder %s56, %s58
      %p62 = scmp.eq.s32.totalorder %s22, 0
      %p63 = por %p61, %p62
      %p64 = scmp.ne.s32.totalorder %s56, %s58
      %p65 = scmp.eq.s32.totalorder %s27, 1
      %p66 = por %p64, %p65
      %p67 = scmp.ne.s32.totalorder %s58, %s59
      %p68 = scmp.eq.s32.totalorder %s27, 0
      %p69 = por %p67, %p68
      %p70 = scmp.ne.s32.totalorder %s58, %s59
      %p71 = scmp.eq.s32.totalorder %s28, 1
      %p72 = por %p70, %p71
      %p74 = scmp.ne.s32.totalorder %s59, %s73
      %p75 = scmp.eq.s32.totalorder %s28, 0
      %p76 = por %p74, %p75
      %s78 = sadd.s32 %s77, 1
      %p81 = scmp.eq.s32.totalorder %s22, 1
      %p82 = scmp.ne.s32.totalorder %s77, %s79
      %p83 = scmp.eq.s32.totalorder %s22, 0
      %p84 = por %p82, %p83
      %p85 = scmp.ne.s32.totalorder %s77, %s79
      %p86 = scmp.eq.s32.totalorder %s27, 1
      %p87 = por %p85, %p86
      %p88 = scmp.ne.s32.totalorder %s79, %s80
      %p89 = scmp.eq.s32.totalorder %s27, 0
      %p90 = por %p88, %p89
      %p91 = scmp.ne.s32.totalorder %s79, %s80
      %p92 = scmp.eq.s32.totalorder %s28, 1
      %p93 = por %p91, %p92
      %p95 = scmp.ne.s32.totalorder %s80, %s94
      %p96 = scmp.eq.s32.totalorder %s28, 0
      %p97 = por %p95, %p96
      %s99 = sadd.s32 %s98, 1
      %p102 = scmp.eq.s32.totalorder %s22, 1
      %p103 = scmp.ne.s32.totalorder %s98, %s100
      %p104 = scmp.eq.s32.totalorder %s22, 0
      %p105 = por %p103, %p104
      %p106 = scmp.ne.s32.totalorder %s98, %s100
      %p107 = scmp.eq.s32.totalorder %s27, 1
      %p108 = por %p106, %p107
      %p109 = scmp.ne.s32.totalorder %s100, %s101
      %p110 = scmp.eq.s32.totalorder %s27, 0
      %p111 = por %p109, %p110
      %p112 = scmp.ne.s32.totalorder %s100, %s101
      %p113 = scmp.eq.s32.totalorder %s28, 1
      %p114 = por %p112, %p113
      %p116 = scmp.ne.s32.totalorder %s101, %s115
      %p117 = scmp.eq.s32.totalorder %s28, 0
      %p118 = por %p116, %p117
      %s120 = sadd.s32 %s119, 1
      %p123 = scmp.eq.s32.totalorder %s22, 1
      %p124 = scmp.ne.s32.totalorder %s119, %s121
      %p125 = scmp.eq.s32.totalorder %s22, 0
      %p126 = por %p124, %p125
      %p127 = scmp.ne.s32.totalorder %s119, %s121
      %p128 = scmp.eq.s32.totalorder %s27, 1
      %p129 = por %p127, %p128
      %p130 = scmp.ne.s32.totalorder %s121, %s122
      %p131 = scmp.eq.s32.totalorder %s27, 0
      %p132 = por %p130, %p131
      %p133 = scmp.ne.s32.totalorder %s121, %s122
      %p134 = scmp.eq.s32.totalorder %s28, 1
      %p135 = por %p133, %p134
      %p137 = scmp.ne.s32.totalorder %s122, %s136
      %p138 = scmp.eq.s32.totalorder %s28, 0
      %p139 = por %p137, %p138
      %s141 = sadd.s32 %s140, 1
      %p144 = scmp.eq.s32.totalorder %s22, 1
      %p145 = scmp.ne.s32.totalorder %s140, %s142
      %p146 = scmp.eq.s32.totalorder %s22, 0
      %p147 = por %p145, %p146
      %p148 = scmp.ne.s32.totalorder %s140, %s142
      %p149 = scmp.eq.s32.totalorder %s27, 1
      %p150 = por %p148, %p149
      %p151 = scmp.ne.s32.totalorder %s142, %s143
      %p152 = scmp.eq.s32.totalorder %s27, 0
      %p153 = por %p151, %p152
      %p154 = scmp.ne.s32.totalorder %s142, %s143
      %p155 = scmp.eq.s32.totalorder %s28, 1
      %p156 = por %p154, %p155
      %p158 = scmp.ne.s32.totalorder %s143, %s157
      %p159 = scmp.eq.s32.totalorder %s28, 0
      %p160 = por %p158, %p159
      %s162 = sadd.s32 %s161, 1
      %p165 = scmp.eq.s32.totalorder %s22, 1
      %p166 = scmp.ne.s32.totalorder %s161, %s163
      %p167 = scmp.eq.s32.totalorder %s22, 0
      %p168 = por %p166, %p167
      %p169 = scmp.ne.s32.totalorder %s161, %s163
      %p170 = scmp.eq.s32.totalorder %s27, 1
      %p171 = por %p169, %p170
      %p172 = scmp.ne.s32.totalorder %s163, %s164
      %p173 = scmp.eq.s32.totalorder %s27, 0
      %p174 = por %p172, %p173
      %p175 = scmp.ne.s32.totalorder %s163, %s164
      %p176 = scmp.eq.s32.totalorder %s28, 1
      %p177 = por %p175, %p176
      %p179 = scmp.ne.s32.totalorder %s164, %s178
      %p180 = scmp.eq.s32.totalorder %s28, 0
      %p181 = por %p179, %p180
      %s182 = ssub.s32 %s22, %s29
      %p183 = scmp.eq.s32.totalorder %s182, 0
      %s185 = sadd.s32 %s184, 1
      %s186 = scalar_select %p183, %s184, %s185
      %p189 = pneg %p183
      %p190 = scmp.eq.s32.totalorder %s22, 1
      %p191 = por %p189, %p190
      %p192 = scmp.ne.s32.totalorder %s184, %s187
      %p193 = scmp.eq.s32.totalorder %s22, 0
      %p194 = por %p192, %p193
      %p195 = scmp.ne.s32.totalorder %s184, %s187
      %p196 = scmp.eq.s32.totalorder %s27, 1
      %p197 = por %p195, %p196
      %p198 = scmp.ne.s32.totalorder %s187, %s188
      %p199 = scmp.eq.s32.totalorder %s27, 0
      %p200 = por %p198, %p199
      %p201 = scmp.ne.s32.totalorder %s187, %s188
      %p202 = scmp.eq.s32.totalorder %s28, 1
      %p203 = por %p201, %p202
      %p205 = scmp.ne.s32.totalorder %s188, %s204
      %p206 = scmp.eq.s32.totalorder %s28, 0
      %p207 = por %p205, %p206
      %s208 = ssub.s32 %s22, %s29
      %p209 = scmp.eq.s32.totalorder %s208, 0
      %s211 = sadd.s32 %s210, 1
      %s212 = scalar_select %p209, %s210, %s211
      %p215 = pneg %p209
      %p216 = scmp.eq.s32.totalorder %s22, 1
      %p217 = por %p215, %p216
      %p218 = scmp.ne.s32.totalorder %s210, %s213
      %p219 = scmp.eq.s32.totalorder %s22, 0
      %p220 = por %p218, %p219
      %p221 = scmp.ne.s32.totalorder %s210, %s213
      %p222 = scmp.eq.s32.totalorder %s27, 1
      %p223 = por %p221, %p222
      %p224 = scmp.ne.s32.totalorder %s213, %s214
      %p225 = scmp.eq.s32.totalorder %s27, 0
      %p226 = por %p224, %p225
      %p227 = scmp.ne.s32.totalorder %s213, %s214
      %p228 = scmp.eq.s32.totalorder %s28, 1
      %p229 = por %p227, %p228
      %p231 = scmp.ne.s32.totalorder %s214, %s230
      %p232 = scmp.eq.s32.totalorder %s28, 0
      %p233 = por %p231, %p232
      %p234 = scmp.le.s32.totalorder 1, %s22
      %p235 = scmp.lt.s32.totalorder %s22, 3
      %p236 = pnand %p234, %p235
      %p237 = pneg %p236
      // Predicated region
      $region9: #{tpu_custom_call.1} parent=5 // pred_check
        _
      $region10: #{tpu_custom_call.1} parent=5 // pred_check_branch
        %239 = sbr.rel (%p236) target = $region12
      $region11: #{tpu_custom_call.1} parent=5 // pred_region
        %s240 = ssub.s32 %s22, 1
        // Predicated region
        $region13: #{tpu_custom_call.1} parent=11 // pred_check
          %p241 = pneg %p69
        $region14: #{tpu_custom_call.1} parent=11 // pred_check_branch
          %243 = sbr.rel (%p241) target = $region16
        $region15: #{tpu_custom_call.1} parent=11 // pred_region
          _
        $region16: #{tpu_custom_call.1} parent=11 // pred_fallthru
          _
        // Predicated region
        $region17: #{tpu_custom_call.1} parent=11 // pred_check
          %p244 = pneg %p90
        $region18: #{tpu_custom_call.1} parent=11 // pred_check_branch
          %246 = sbr.rel (%p244) target = $region20
        $region19: #{tpu_custom_call.1} parent=11 // pred_region
          _
        $region20: #{tpu_custom_call.1} parent=11 // pred_fallthru
          _
        // Predicated region
        $region21: #{tpu_custom_call.1} parent=11 // pred_check
          %p247 = pneg %p111
        $region22: #{tpu_custom_call.1} parent=11 // pred_check_branch
          %249 = sbr.rel (%p247) target = $region24
        $region23: #{tpu_custom_call.1} parent=11 // pred_region
          _
        $region24: #{tpu_custom_call.1} parent=11 // pred_fallthru
          _
        // Predicated region
        $region25: #{tpu_custom_call.1} parent=11 // pred_check
          %p250 = pneg %p132
        $region26: #{tpu_custom_call.1} parent=11 // pred_check_branch
          %252 = sbr.rel (%p250) target = $region28
        $region27: #{tpu_custom_call.1} parent=11 // pred_region
          _
        $region28: #{tpu_custom_call.1} parent=11 // pred_fallthru
          _
        // Predicated region
        $region29: #{tpu_custom_call.1} parent=11 // pred_check
          %p253 = pneg %p153
        $region30: #{tpu_custom_call.1} parent=11 // pred_check_branch
          %255 = sbr.rel (%p253) target = $region32
        $region31: #{tpu_custom_call.1} parent=11 // pred_region
          %s257 = ssub.s32 3200, 3200
          %258 = vsyncadd [#allocation6], %s257
          %s259 = sshll.u32 [#allocation5], 4
          %s260 = int_to_ptr.vmem [resolvable:$true] %s259
          %265 = dma.hbm_to_vmem [thread:$0]  %s5, 3200, %s260, [#allocation6], 64, 64, 4
        $region32: #{tpu_custom_call.1} parent=11 // pred_fallthru
          _
        // Predicated region
        $region33: #{tpu_custom_call.1} parent=11 // pred_check
          %p266 = pneg %p174
        $region34: #{tpu_custom_call.1} parent=11 // pred_check_branch
          %268 = sbr.rel (%p266) target = $region36
        $region35: #{tpu_custom_call.1} parent=11 // pred_region
          _
        $region36: #{tpu_custom_call.1} parent=11 // pred_fallthru
          _
      $region12: #{tpu_custom_call.1} parent=5 // pred_fallthru
        _
      %p269 = scmp.lt.s32.totalorder %s22, 2
      // Predicated region
      $region37: #{tpu_custom_call.1} parent=5 // pred_check
        %p270 = pneg %p269
      $region38: #{tpu_custom_call.1} parent=5 // pred_check_branch
        %272 = sbr.rel (%p270) target = $region40
      $region39: #{tpu_custom_call.1} parent=5 // pred_region
        // Predicated region
        $region41: #{tpu_custom_call.1} parent=39 // pred_check
          %p273 = pneg %p42
        $region42: #{tpu_custom_call.1} parent=39 // pred_check_branch
          %275 = sbr.rel (%p273) target = $region44
        $region43: #{tpu_custom_call.1} parent=39 // pred_region
          %p276 = scmp.lt.s32.totalorder %s22, 1
          %s277 = scalar_select %p276, %s22, 1
          %s278 = smul.addr %s277, 13
          %s279 = smul.addr %s278, 2
          %s280 = scalar_lea.vmem %s0, %s279
        $region44: #{tpu_custom_call.1} parent=39 // pred_fallthru
          _
      $region40: #{tpu_custom_call.1} parent=5 // pred_fallthru
        _
      %p281 = scmp.le.s32.totalorder 1, %s22
      %p282 = scmp.lt.s32.totalorder %s22, 3
      %p283 = pnand %p281, %p282
      %p284 = pneg %p283
      // Predicated region
      $region45: #{tpu_custom_call.1} parent=5 // pred_check
        _
      $region46: #{tpu_custom_call.1} parent=5 // pred_check_branch
        %286 = sbr.rel (%p283) target = $region48
      $region47: #{tpu_custom_call.1} parent=5 // pred_region
        %s287 = ssub.s32 %s22, 1
        // Predicated region
        $region49: #{tpu_custom_call.1} parent=47 // pred_check
          %p288 = pneg %p153
        $region50: #{tpu_custom_call.1} parent=47 // pred_check_branch
          %290 = sbr.rel (%p288) target = $region52
        $region51: #{tpu_custom_call.1} parent=47 // pred_region
          %291 = dma.done [#allocation6], 3200
        $region52: #{tpu_custom_call.1} parent=47 // pred_fallthru
          _
        %p292 = scmp.lt.s32.totalorder %s27, 1
        %s293 = scalar_select %p292, %s27, 1
        %s294 = smul.addr %s293, 13
        %s295 = smul.addr %s294, 2
        %s296 = scalar_lea.vmem %s0, %s295
        %p297 = pneg %p48
        %p298 = pneg %p45
        %p299 = pneg %p69
        %p300 = pneg %p66
        %p301 = pneg %p90
        %p302 = pneg %p87
        %p303 = pneg %p111
        %p304 = pneg %p108
        %p305 = pneg %p132
        %p306 = pneg %p129
        %p307 = pneg %p153
        %p308 = pneg %p150
        %p309 = pneg %p174
        %p310 = pneg %p171
        %p311 = pneg %p200
        %p312 = pneg %p197
        %s313 = sand.u32 %s187, 1
        %s314 = scalar_lea.sflag [#allocation7], %s313
        %s315 = sand.u32 %s187, 1
        %s316 = smul.addr %s315, 8
        %s317 = scalar_lea.vmem [#allocation8], %s316
        %p318 = pneg %p226
        %p319 = pneg %p223
        %s320 = sand.u32 %s213, 1
        %s321 = scalar_lea.sflag [#allocation10], %s320
        %s322 = sand.u32 %s213, 1
        %s323 = smul.addr %s322, 2
        %s324 = scalar_lea.vmem [#allocation9], %s323
        %p325 = scmp.lt.s32.totalorder %s27, 1
        %s326 = scalar_select %p325, %s27, 1
        %s327 = smul.addr %s326, 13
        %s328 = smul.addr %s327, 2
        %s329 = scalar_lea.vmem %s0, %s328
        %v331 = vld [vmem:[%s329] sm:$0x3]
        %v332 = vld [vmem:[%s329 + $0x2] sm:$0x3]
        %v333 = vld [vmem:[%s329 + $0x4] sm:$0x3]
        %v334 = vld [vmem:[%s329 + $0x6] sm:$0x3]
        %v335 = vld [vmem:[%s329 + $0x8] sm:$0x3]
        %v336 = vld [vmem:[%s329 + $0xa] sm:$0x3]
        %v337 = vld [vmem:[%s329 + $0xc] sm:$0x3]
        %v338 = vld [vmem:[%s329 + $0xe] sm:$0x3]
        %v339 = vld [vmem:[%s329 + $0x10] sm:$0x3]
        %v340 = vld [vmem:[%s329 + $0x12] sm:$0x3]
        %v341 = vld [vmem:[%s329 + $0x14] sm:$0x3]
        %v342 = vld [vmem:[%s329 + $0x16] sm:$0x3]
        %v343 = vld [vmem:[%s329 + $0x18] sm:$0x3]
        %v344 = vunpack.c.l.s8.bf16 %v331
        %v345 = vunpack.c.l.s8.bf16 %v332
        %v346 = vunpack.c.l.s8.bf16 %v333
        %v347 = vunpack.c.l.s8.bf16 %v334
        %v348 = vunpack.c.l.s8.bf16 %v335
        %v349 = vunpack.c.l.s8.bf16 %v336
        %v350 = vunpack.c.l.s8.bf16 %v337
        %v351 = vunpack.c.l.s8.bf16 %v338
        %v352 = vunpack.c.l.s8.bf16 %v339
        %v353 = vunpack.c.l.s8.bf16 %v340
        %v354 = vunpack.c.l.s8.bf16 %v341
        %v355 = vunpack.c.l.s8.bf16 %v342
        %v356 = vunpack.c.l.s8.bf16 %v343
        %v357 = vld [vmem:[%s1] sm:$0xf]
        %v358 = vld [vmem:[%s1 + $0x4] sm:$0xf]
        %v359 = vld [vmem:[%s1 + $0x8] sm:$0xf]
        %v360 = vld [vmem:[%s1 + $0xc] sm:$0xf]
        %v361 = vld [vmem:[%s1 + $0x10] sm:$0x3]
        %v362 = vld [vmem:[%s2] sm:$0x1]
        %v364 = vlaneseq
        %v365 = vshrl.u32 %v364, 7
        %v366 = vsub.s32 0, %v365
        %v367 = vrot.slane %v362, %v366
        %v382 = vunpack.c.l.b16 %v344
        %v383 = vunpack.c.l.b16 %v345
        %v384 = vunpack.c.l.b16 %v346
        %v385 = vunpack.c.l.b16 %v347
        %v386 = vunpack.c.l.b16 %v348
        %v387 = vunpack.c.l.b16 %v349
        %v388 = vunpack.c.l.b16 %v350
        %v389 = vunpack.c.l.b16 %v351
        %v390 = vunpack.c.l.b16 %v352
        %v391 = vunpack.c.l.b16 %v353
        %v392 = vunpack.c.l.b16 %v354
        %v393 = vunpack.c.l.b16 %v355
        %v394 = vunpack.c.l.b16 %v356
        %v395 = vpack.c.b16 %v383, %v382
        %v396 = vpack.c.b16 %v385, %v384
        %v397 = vpack.c.b16 %v387, %v386
        %v398 = vpack.c.b16 %v389, %v388
        %v399 = vpack.c.b16 %v391, %v390
        %v400 = vpack.c.b16 %v393, %v392
        %v401 = vpack.c.b16 %v394, %v394
        %v407 = vunpack.c.l.b16 %v357
        %v408 = vunpack.c.l.b16 %v358
        %v409 = vunpack.c.l.b16 %v359
        %v410 = vunpack.c.l.b16 %v360
        %v411 = vunpack.c.l.b16 %v361
        %v412 = vpack.c.b16 %v408, %v407
        %v413 = vpack.c.b16 %v410, %v409
        %v414 = vpack.c.b16 %v411, %v411
        %vm417 = vcmask 293888
        %v419 = vsel %vm417, %v395, 0
        %v422 = vsel %vm417, %v396, 0
        %v425 = vsel %vm417, %v397, 0
        %v428 = vsel %vm417, %v398, 0
        %v431 = vsel %vm417, %v399, 0
        %v434 = vsel %vm417, %v400, 0
        %v437 = vsel %vm417, %v401, 0
        %vm439 = vcmask 1041408
        %v441 = vsel %vm439, %v414, 0
        %443 = vmatprep.subr.bf16.mxu0 0
        %444 = vmatpush1.bf16.msra.mxu0 0
        %445 = vmatprep.subr.bf16.mxu0 0
        %446 = vmatpush1.bf16.msra.mxu0 0
        %447 = vmatprep.subr.bf16.mxu0 0
        %448 = vmatpush1.bf16.msra.mxu0 0
        %449 = vmatprep.subr.bf16.mxu0 0
        %450 = vmatpush1.bf16.msra.mxu0 0
        %451 = vmatprep.subr.bf16.mxu0 0
        %452 = vmatpush1.bf16.msra.mxu0 0
        %453 = vmatprep.subr.bf16.mxu0 0
        %454 = vmatpush1.bf16.msra.mxu0 %v441
        %455 = vmatprep.subr.bf16.mxu0 0
        %456 = vmatpush1.bf16.msra.mxu0 %v413
        %457 = vmatprep.subr.bf16.mxu0 0
        %458 = vmatpush1.bf16.msra.mxu0 %v412
        %459 = vmatprep.subr.bf16.mxu0 0
        %460 = vmatpush2.bf16.msra.mxu0 0
        %461 = vmatprep.subr.bf16.mxu0 0
        %462 = vmatpush2.bf16.msra.mxu0 0
        %463 = vmatprep.subr.bf16.mxu0 0
        %464 = vmatpush2.bf16.msra.mxu0 0
        %465 = vmatprep.subr.bf16.mxu0 0
        %466 = vmatpush2.bf16.msra.mxu0 0
        %467 = vmatprep.subr.bf16.mxu0 0
        %468 = vmatpush2.bf16.msra.mxu0 0
        %469 = vmatprep.subr.bf16.mxu0 0
        %470 = vmatpush2.bf16.msra.mxu0 0
        %471 = vmatprep.subr.bf16.mxu0 0
        %472 = vmatpush2.bf16.msra.mxu0 0
        %473 = vmatprep.subr.bf16.mxu0 0
        %474 = vmatpush2.bf16.msra.mxu0 0
        %475 = vmatprep.mubr.bf16.mxu0 0
        %476 = vmatmul.mubr.bf16.gmra.mxu0 %v419
        %v477 = vpop.f32.mrf.mxu0
        %v478 = vadd.f32 %v367, %v477
        %v479 = vpop.f32.mrf.mxu0
        %v480 = vpop.f32.mrf.mxu0
        %v481 = vadd.f32 %v367, %v480
        %v482 = vpop.f32.mrf.mxu0
        %483 = vmatprep.mubr.bf16.mxu0 0
        %484 = vmatmul.mubr.bf16.gmra.mxu0 %v422
        %v485 = vpop.f32.mrf.mxu0
        %v486 = vadd.f32 %v367, %v485
        %v487 = vpop.f32.mrf.mxu0
        %v488 = vpop.f32.mrf.mxu0
        %v489 = vadd.f32 %v367, %v488
        %v490 = vpop.f32.mrf.mxu0
        %491 = vmatprep.mubr.bf16.mxu0 0
        %492 = vmatmul.mubr.bf16.gmra.mxu0 %v425
        %v493 = vpop.f32.mrf.mxu0
        %v494 = vadd.f32 %v367, %v493
        %v495 = vpop.f32.mrf.mxu0
        %v496 = vpop.f32.mrf.mxu0
        %v497 = vadd.f32 %v367, %v496
        %v498 = vpop.f32.mrf.mxu0
        %499 = vmatprep.mubr.bf16.mxu0 0
        %500 = vmatmul.mubr.bf16.gmra.mxu0 %v428
        %v501 = vpop.f32.mrf.mxu0
        %v502 = vadd.f32 %v367, %v501
        %v503 = vpop.f32.mrf.mxu0
        %v504 = vpop.f32.mrf.mxu0
        %v505 = vadd.f32 %v367, %v504
        %v506 = vpop.f32.mrf.mxu0
        %507 = vmatprep.mubr.bf16.mxu0 0
        %508 = vmatmul.mubr.bf16.gmra.mxu0 %v431
        %v509 = vpop.f32.mrf.mxu0
        %v510 = vadd.f32 %v367, %v509
        %v511 = vpop.f32.mrf.mxu0
        %v512 = vpop.f32.mrf.mxu0
        %v513 = vadd.f32 %v367, %v512
        %v514 = vpop.f32.mrf.mxu0
        %515 = vmatprep.mubr.bf16.mxu0 0
        %516 = vmatmul.mubr.bf16.gmra.mxu0 %v434
        %v517 = vpop.f32.mrf.mxu0
        %v518 = vadd.f32 %v367, %v517
        %v519 = vpop.f32.mrf.mxu0
        %v520 = vpop.f32.mrf.mxu0
        %v521 = vadd.f32 %v367, %v520
        %v522 = vpop.f32.mrf.mxu0
        %523 = vmatprep.mubr.bf16.mxu0 0
        %524 = vmatmul.mubr.bf16.gmra.mxu0 %v437
        %v525 = vpop.f32.mrf.mxu0
        %v526 = vadd.f32 %v367, %v525
        %v527 = vpop.f32.mrf.mxu0
        %v528 = vpop.f32.mrf.mxu0
        %v529 = vpop.f32.mrf.mxu0
        %530 = vdwg.mxu0
        %v531 = vmax.f32 %v478, 0.0
        %v532 = vmax.f32 %v481, 0.0
        %v533 = vmax.f32 %v486, 0.0
        %v534 = vmax.f32 %v489, 0.0
        %v535 = vmax.f32 %v494, 0.0
        %v536 = vmax.f32 %v497, 0.0
        %v537 = vmax.f32 %v502, 0.0
        %v538 = vmax.f32 %v505, 0.0
        %v539 = vmax.f32 %v510, 0.0
        %v540 = vmax.f32 %v513, 0.0
        %v541 = vmax.f32 %v518, 0.0
        %v542 = vmax.f32 %v521, 0.0
        %v543 = vmax.f32 %v526, 0.0
        %vm544 = vcmask 64512
        %545 = vst.msk [vmem:[#allocation2] sm:$0xff] %vm544, %v531
        %546 = vst.msk [vmem:[#allocation2 + $0x8] sm:$0xff] %vm544, %v532
        %547 = vst.msk [vmem:[#allocation2 + $0x10] sm:$0xff] %vm544, %v533
        %548 = vst.msk [vmem:[#allocation2 + $0x18] sm:$0xff] %vm544, %v534
        %vm549 = vcmask 59392
        %550 = vst.msk [vmem:[#allocation2 + $0x20] sm:$0x7] %vm549, %v535
        %vm551 = vcmask 64515
        %552 = vst.msk [vmem:[#allocation2 + $0x20] sm:$0xf8] %vm551, %v537
        %553 = vst.msk [vmem:[#allocation2 + $0x28] sm:$0xff] %vm544, %v538
        %554 = vst.msk [vmem:[#allocation2 + $0x30] sm:$0xff] %vm544, %v539
        %555 = vst.msk [vmem:[#allocation2 + $0x38] sm:$0xff] %vm544, %v540
        %vm556 = vcmask 62464
        %557 = vst.msk [vmem:[#allocation2 + $0x40] sm:$0x3f] %vm556, %v541
        %563 = vrot.lane.b32.xlu0 %v531, 8
        %v564 = vpop.permute.xlu0 %563
        %565 = vrot.lane.b32.xlu0 %v532, 8
        %v566 = vpop.permute.xlu0 %565
        %567 = vrot.lane.b32.xlu0 %v533, 8
        %v568 = vpop.permute.xlu0 %567
        %569 = vrot.lane.b32.xlu0 %v534, 8
        %v570 = vpop.permute.xlu0 %569
        %571 = vrot.lane.b32.xlu0 %v535, 8
        %v572 = vpop.permute.xlu0 %571
        %vm578 = vcmask 130113
        %579 = vst.msk [vmem:[#allocation2 - $0x1] sm:$0xfe] %vm578, %v564
        %vm580 = vcmask 130112
        %581 = vst.msk [vmem:[#allocation2 + $0x7] sm:$0xff] %vm580, %v566
        %582 = vst.msk [vmem:[#allocation2 + $0xf] sm:$0xff] %vm580, %v568
        %583 = vst.msk [vmem:[#allocation2 + $0x17] sm:$0xff] %vm580, %v570
        %vm584 = vcmask 126016
        %585 = vst.msk [vmem:[#allocation2 + $0x1f] sm:$0xf] %vm584, %v572
        %591 = vrot.lane.b32.xlu0 %v537, 8
        %v592 = vpop.permute.xlu0 %591
        %593 = vrot.lane.b32.xlu0 %v538, 8
        %v594 = vpop.permute.xlu0 %593
        %595 = vrot.lane.b32.xlu0 %v539, 8
        %v596 = vpop.permute.xlu0 %595
        %597 = vrot.lane.b32.xlu0 %v540, 8
        %v598 = vpop.permute.xlu0 %597
        %599 = vrot.lane.b32.xlu0 %v541, 8
        %v600 = vpop.permute.xlu0 %599
        %vm606 = vcmask 130116
        %607 = vst.msk [vmem:[#allocation2 + $0x1f] sm:$0xf0] %vm606, %v592
        %608 = vst.msk [vmem:[#allocation2 + $0x27] sm:$0xff] %vm580, %v594
        %609 = vst.msk [vmem:[#allocation2 + $0x2f] sm:$0xff] %vm580, %v596
        %610 = vst.msk [vmem:[#allocation2 + $0x37] sm:$0xff] %vm580, %v598
        %vm611 = vcmask 129088
        %612 = vst.msk [vmem:[#allocation2 + $0x3f] sm:$0x7f] %vm611, %v600
        %613 = vrot.lane.b32.xlu0 %v531, 16
        %v614 = vpop.permute.xlu0 %613
        %615 = vrot.lane.b32.xlu0 %v532, 16
        %v616 = vpop.permute.xlu0 %615
        %617 = vrot.lane.b32.xlu0 %v533, 16
        %v618 = vpop.permute.xlu0 %617
        %619 = vrot.lane.b32.xlu0 %v534, 16
        %v620 = vpop.permute.xlu0 %619
        %621 = vrot.lane.b32.xlu0 %v535, 16
        %v622 = vpop.permute.xlu0 %621
        %vm628 = vcmask 195714
        %629 = vst.msk [vmem:[#allocation2 - $0x2] sm:$0xfc] %vm628, %v614
        %vm630 = vcmask 195712
        %631 = vst.msk [vmem:[#allocation2 + $0x6] sm:$0xff] %vm630, %v616
        %632 = vst.msk [vmem:[#allocation2 + $0xe] sm:$0xff] %vm630, %v618
        %633 = vst.msk [vmem:[#allocation2 + $0x16] sm:$0xff] %vm630, %v620
        %vm634 = vcmask 192640
        %635 = vst.msk [vmem:[#allocation2 + $0x1e] sm:$0x1f] %vm634, %v622
        %636 = vrot.lane.b32.xlu0 %v537, 16
        %v637 = vpop.permute.xlu0 %636
        %638 = vrot.lane.b32.xlu0 %v538, 16
        %v639 = vpop.permute.xlu0 %638
        %640 = vrot.lane.b32.xlu0 %v539, 16
        %v641 = vpop.permute.xlu0 %640
        %642 = vrot.lane.b32.xlu0 %v540, 16
        %v643 = vpop.permute.xlu0 %642
        %644 = vrot.lane.b32.xlu0 %v541, 16
        %v645 = vpop.permute.xlu0 %644
        %vm651 = vcmask 195717
        %652 = vst.msk [vmem:[#allocation2 + $0x1e] sm:$0xe0] %vm651, %v637
        %653 = vst.msk [vmem:[#allocation2 + $0x26] sm:$0xff] %vm630, %v639
        %654 = vst.msk [vmem:[#allocation2 + $0x2e] sm:$0xff] %vm630, %v641
        %655 = vst.msk [vmem:[#allocation2 + $0x36] sm:$0xff] %vm630, %v643
        %656 = vst.msk [vmem:[#allocation2 + $0x3e] sm:$0xff] %vm630, %v645
        %658 = vrot.lane.b32.xlu0 %v531, 24
        %v659 = vpop.permute.xlu0 %658
        %660 = vrot.lane.b32.xlu0 %v532, 24
        %v661 = vpop.permute.xlu0 %660
        %662 = vrot.lane.b32.xlu0 %v533, 24
        %v663 = vpop.permute.xlu0 %662
        %664 = vrot.lane.b32.xlu0 %v534, 24
        %v665 = vpop.permute.xlu0 %664
        %666 = vrot.lane.b32.xlu0 %v535, 24
        %v667 = vpop.permute.xlu0 %666
        %668 = vrot.lane.b32.xlu0 %v536, 24
        %v669 = vpop.permute.xlu0 %668
        %vm676 = vcmask 261319
        %677 = vst.msk [vmem:[#allocation2 - $0x7] sm:$0x80] %vm676, %v659
        %vm678 = vcmask 261312
        %679 = vst.msk [vmem:[#allocation2 + $0x1] sm:$0xff] %vm678, %v661
        %680 = vst.msk [vmem:[#allocation2 + $0x9] sm:$0xff] %vm678, %v663
        %681 = vst.msk [vmem:[#allocation2 + $0x11] sm:$0xff] %vm678, %v665
        %682 = vst.msk [vmem:[#allocation2 + $0x19] sm:$0xff] %vm678, %v667
        %vm683 = vcmask 255168
        %684 = vst.msk [vmem:[#allocation2 + $0x21] sm:$0x3] %vm683, %v669
        %686 = vrot.lane.b32.xlu0 %v538, 24
        %v687 = vpop.permute.xlu0 %686
        %688 = vrot.lane.b32.xlu0 %v539, 24
        %v689 = vpop.permute.xlu0 %688
        %690 = vrot.lane.b32.xlu0 %v540, 24
        %v691 = vpop.permute.xlu0 %690
        %692 = vrot.lane.b32.xlu0 %v541, 24
        %v693 = vpop.permute.xlu0 %692
        %694 = vrot.lane.b32.xlu0 %v542, 24
        %v695 = vpop.permute.xlu0 %694
        %vm701 = vcmask 261314
        %702 = vst.msk [vmem:[#allocation2 + $0x21] sm:$0xfc] %vm701, %v687
        %703 = vst.msk [vmem:[#allocation2 + $0x29] sm:$0xff] %vm678, %v689
        %704 = vst.msk [vmem:[#allocation2 + $0x31] sm:$0xff] %vm678, %v691
        %705 = vst.msk [vmem:[#allocation2 + $0x39] sm:$0xff] %vm678, %v693
        %vm706 = vcmask 258240
        %707 = vst.msk [vmem:[#allocation2 + $0x41] sm:$0x1f] %vm706, %v695
        %708 = vrot.lane.b32.xlu0 %v532, 32
        %v709 = vpop.permute.xlu0 %708
        %710 = vrot.lane.b32.xlu0 %v533, 32
        %v711 = vpop.permute.xlu0 %710
        %712 = vrot.lane.b32.xlu0 %v534, 32
        %v713 = vpop.permute.xlu0 %712
        %714 = vrot.lane.b32.xlu0 %v535, 32
        %v715 = vpop.permute.xlu0 %714
        %716 = vrot.lane.b32.xlu0 %v536, 32
        %v717 = vpop.permute.xlu0 %716
        %vm723 = vcmask 326912
        %724 = vst.msk [vmem:[#allocation2] sm:$0xff] %vm723, %v709
        %725 = vst.msk [vmem:[#allocation2 + $0x8] sm:$0xff] %vm723, %v711
        %726 = vst.msk [vmem:[#allocation2 + $0x10] sm:$0xff] %vm723, %v713
        %727 = vst.msk [vmem:[#allocation2 + $0x18] sm:$0xff] %vm723, %v715
        %vm728 = vcmask 321792
        %729 = vst.msk [vmem:[#allocation2 + $0x20] sm:$0x7] %vm728, %v717
        %730 = vrot.lane.b32.xlu0 %v538, 32
        %v731 = vpop.permute.xlu0 %730
        %732 = vrot.lane.b32.xlu0 %v539, 32
        %v733 = vpop.permute.xlu0 %732
        %734 = vrot.lane.b32.xlu0 %v540, 32
        %v735 = vpop.permute.xlu0 %734
        %736 = vrot.lane.b32.xlu0 %v541, 32
        %v737 = vpop.permute.xlu0 %736
        %738 = vrot.lane.b32.xlu0 %v542, 32
        %v739 = vpop.permute.xlu0 %738
        %vm745 = vcmask 326915
        %746 = vst.msk [vmem:[#allocation2 + $0x20] sm:$0xf8] %vm745, %v731
        %747 = vst.msk [vmem:[#allocation2 + $0x28] sm:$0xff] %vm723, %v733
        %748 = vst.msk [vmem:[#allocation2 + $0x30] sm:$0xff] %vm723, %v735
        %749 = vst.msk [vmem:[#allocation2 + $0x38] sm:$0xff] %vm723, %v737
        %vm750 = vcmask 324864
        %751 = vst.msk [vmem:[#allocation2 + $0x40] sm:$0x3f] %vm750, %v739
        %752 = vrot.lane.b32.xlu0 %v532, 40
        %v753 = vpop.permute.xlu0 %752
        %754 = vrot.lane.b32.xlu0 %v533, 40
        %v755 = vpop.permute.xlu0 %754
        %756 = vrot.lane.b32.xlu0 %v534, 40
        %v757 = vpop.permute.xlu0 %756
        %758 = vrot.lane.b32.xlu0 %v535, 40
        %v759 = vpop.permute.xlu0 %758
        %760 = vrot.lane.b32.xlu0 %v536, 40
        %v761 = vpop.permute.xlu0 %760
        %vm767 = vcmask 392513
        %768 = vst.msk [vmem:[#allocation2 - $0x1] sm:$0xfe] %vm767, %v753
        %vm769 = vcmask 392512
        %770 = vst.msk [vmem:[#allocation2 + $0x7] sm:$0xff] %vm769, %v755
        %771 = vst.msk [vmem:[#allocation2 + $0xf] sm:$0xff] %vm769, %v757
        %772 = vst.msk [vmem:[#allocation2 + $0x17] sm:$0xff] %vm769, %v759
        %vm773 = vcmask 388416
        %774 = vst.msk [vmem:[#allocation2 + $0x1f] sm:$0xf] %vm773, %v761
        %775 = vrot.lane.b32.xlu0 %v538, 40
        %v776 = vpop.permute.xlu0 %775
        %777 = vrot.lane.b32.xlu0 %v539, 40
        %v778 = vpop.permute.xlu0 %777
        %779 = vrot.lane.b32.xlu0 %v540, 40
        %v780 = vpop.permute.xlu0 %779
        %781 = vrot.lane.b32.xlu0 %v541, 40
        %v782 = vpop.permute.xlu0 %781
        %783 = vrot.lane.b32.xlu0 %v542, 40
        %v784 = vpop.permute.xlu0 %783
        %vm790 = vcmask 392516
        %791 = vst.msk [vmem:[#allocation2 + $0x1f] sm:$0xf0] %vm790, %v776
        %792 = vst.msk [vmem:[#allocation2 + $0x27] sm:$0xff] %vm769, %v778
        %793 = vst.msk [vmem:[#allocation2 + $0x2f] sm:$0xff] %vm769, %v780
        %794 = vst.msk [vmem:[#allocation2 + $0x37] sm:$0xff] %vm769, %v782
        %vm795 = vcmask 391488
        %796 = vst.msk [vmem:[#allocation2 + $0x3f] sm:$0x7f] %vm795, %v784
        %797 = vrot.lane.b32.xlu0 %v532, 48
        %v798 = vpop.permute.xlu0 %797
        %799 = vrot.lane.b32.xlu0 %v533, 48
        %v800 = vpop.permute.xlu0 %799
        %801 = vrot.lane.b32.xlu0 %v534, 48
        %v802 = vpop.permute.xlu0 %801
        %803 = vrot.lane.b32.xlu0 %v535, 48
        %v804 = vpop.permute.xlu0 %803
        %805 = vrot.lane.b32.xlu0 %v536, 48
        %v806 = vpop.permute.xlu0 %805
        %807 = vrot.lane.b32.xlu0 %v537, 48
        %v808 = vpop.permute.xlu0 %807
        %vm815 = vcmask 458118
        %816 = vst.msk [vmem:[#allocation2 - $0x6] sm:$0xc0] %vm815, %v798
        %vm817 = vcmask 458112
        %818 = vst.msk [vmem:[#allocation2 + $0x2] sm:$0xff] %vm817, %v800
        %819 = vst.msk [vmem:[#allocation2 + $0xa] sm:$0xff] %vm817, %v802
        %820 = vst.msk [vmem:[#allocation2 + $0x12] sm:$0xff] %vm817, %v804
        %821 = vst.msk [vmem:[#allocation2 + $0x1a] sm:$0xff] %vm817, %v806
        %vm822 = vcmask 450944
        %823 = vst.msk [vmem:[#allocation2 + $0x22] sm:$0x1] %vm822, %v808
        %825 = vrot.lane.b32.xlu0 %v539, 48
        %v826 = vpop.permute.xlu0 %825
        %827 = vrot.lane.b32.xlu0 %v540, 48
        %v828 = vpop.permute.xlu0 %827
        %829 = vrot.lane.b32.xlu0 %v541, 48
        %v830 = vpop.permute.xlu0 %829
        %831 = vrot.lane.b32.xlu0 %v542, 48
        %v832 = vpop.permute.xlu0 %831
        %833 = vrot.lane.b32.xlu0 %v543, 48
        %v834 = vpop.permute.xlu0 %833
        %vm840 = vcmask 458113
        %841 = vst.msk [vmem:[#allocation2 + $0x22] sm:$0xfe] %vm840, %v826
        %842 = vst.msk [vmem:[#allocation2 + $0x2a] sm:$0xff] %vm817, %v828
        %843 = vst.msk [vmem:[#allocation2 + $0x32] sm:$0xff] %vm817, %v830
        %844 = vst.msk [vmem:[#allocation2 + $0x3a] sm:$0xff] %vm817, %v832
        %vm845 = vcmask 454016
        %846 = vst.msk [vmem:[#allocation2 + $0x42] sm:$0xf] %vm845, %v834
        %847 = vrot.lane.b32.xlu0 %v532, 56
        %v848 = vpop.permute.xlu0 %847
        %849 = vrot.lane.b32.xlu0 %v533, 56
        %v850 = vpop.permute.xlu0 %849
        %851 = vrot.lane.b32.xlu0 %v534, 56
        %v852 = vpop.permute.xlu0 %851
        %853 = vrot.lane.b32.xlu0 %v535, 56
        %v854 = vpop.permute.xlu0 %853
        %855 = vrot.lane.b32.xlu0 %v536, 56
        %v856 = vpop.permute.xlu0 %855
        %857 = vrot.lane.b32.xlu0 %v537, 56
        %v858 = vpop.permute.xlu0 %857
        %vm865 = vcmask 523719
        %866 = vst.msk [vmem:[#allocation2 - $0x7] sm:$0x80] %vm865, %v848
        %vm867 = vcmask 523712
        %868 = vst.msk [vmem:[#allocation2 + $0x1] sm:$0xff] %vm867, %v850
        %869 = vst.msk [vmem:[#allocation2 + $0x9] sm:$0xff] %vm867, %v852
        %870 = vst.msk [vmem:[#allocation2 + $0x11] sm:$0xff] %vm867, %v854
        %871 = vst.msk [vmem:[#allocation2 + $0x19] sm:$0xff] %vm867, %v856
        %vm872 = vcmask 517568
        %873 = vst.msk [vmem:[#allocation2 + $0x21] sm:$0x3] %vm872, %v858
        %874 = vrot.lane.b32.xlu0 %v539, 56
        %v875 = vpop.permute.xlu0 %874
        %876 = vrot.lane.b32.xlu0 %v540, 56
        %v877 = vpop.permute.xlu0 %876
        %878 = vrot.lane.b32.xlu0 %v541, 56
        %v879 = vpop.permute.xlu0 %878
        %880 = vrot.lane.b32.xlu0 %v542, 56
        %v881 = vpop.permute.xlu0 %880
        %882 = vrot.lane.b32.xlu0 %v543, 56
        %v883 = vpop.permute.xlu0 %882
        %vm889 = vcmask 523714
        %890 = vst.msk [vmem:[#allocation2 + $0x21] sm:$0xfc] %vm889, %v875
        %891 = vst.msk [vmem:[#allocation2 + $0x29] sm:$0xff] %vm867, %v877
        %892 = vst.msk [vmem:[#allocation2 + $0x31] sm:$0xff] %vm867, %v879
        %893 = vst.msk [vmem:[#allocation2 + $0x39] sm:$0xff] %vm867, %v881
        %vm894 = vcmask 520640
        %895 = vst.msk [vmem:[#allocation2 + $0x41] sm:$0x1f] %vm894, %v883
        %896 = vrot.lane.b32.xlu0 %v533, 64
        %v897 = vpop.permute.xlu0 %896
        %898 = vrot.lane.b32.xlu0 %v534, 64
        %v899 = vpop.permute.xlu0 %898
        %900 = vrot.lane.b32.xlu0 %v535, 64
        %v901 = vpop.permute.xlu0 %900
        %902 = vrot.lane.b32.xlu0 %v536, 64
        %v903 = vpop.permute.xlu0 %902
        %904 = vrot.lane.b32.xlu0 %v537, 64
        %v905 = vpop.permute.xlu0 %904
        %vm911 = vcmask 589312
        %912 = vst.msk [vmem:[#allocation2] sm:$0xff] %vm911, %v897
        %913 = vst.msk [vmem:[#allocation2 + $0x8] sm:$0xff] %vm911, %v899
        %914 = vst.msk [vmem:[#allocation2 + $0x10] sm:$0xff] %vm911, %v901
        %915 = vst.msk [vmem:[#allocation2 + $0x18] sm:$0xff] %vm911, %v903
        %vm916 = vcmask 584192
        %917 = vst.msk [vmem:[#allocation2 + $0x20] sm:$0x7] %vm916, %v905
        %918 = vrot.lane.b32.xlu0 %v539, 64
        %v919 = vpop.permute.xlu0 %918
        %920 = vrot.lane.b32.xlu0 %v540, 64
        %v921 = vpop.permute.xlu0 %920
        %922 = vrot.lane.b32.xlu0 %v541, 64
        %v923 = vpop.permute.xlu0 %922
        %924 = vrot.lane.b32.xlu0 %v542, 64
        %v925 = vpop.permute.xlu0 %924
        %926 = vrot.lane.b32.xlu0 %v543, 64
        %v927 = vpop.permute.xlu0 %926
        %vm933 = vcmask 589315
        %934 = vst.msk [vmem:[#allocation2 + $0x20] sm:$0xf8] %vm933, %v919
        %935 = vst.msk [vmem:[#allocation2 + $0x28] sm:$0xff] %vm911, %v921
        %936 = vst.msk [vmem:[#allocation2 + $0x30] sm:$0xff] %vm911, %v923
        %937 = vst.msk [vmem:[#allocation2 + $0x38] sm:$0xff] %vm911, %v925
        %vm938 = vcmask 587264
        %939 = vst.msk [vmem:[#allocation2 + $0x40] sm:$0x3f] %vm938, %v927
        %v940 = vld [vmem:[#allocation2] sm:$0xff]
        %v941 = vld [vmem:[#allocation2 + $0x8] sm:$0xff]
        %v942 = vld [vmem:[#allocation2 + $0x10] sm:$0xff]
        %v943 = vld [vmem:[#allocation2 + $0x18] sm:$0xff]
        %v944 = vld [vmem:[#allocation2 + $0x20] sm:$0xff]
        %v945 = vld [vmem:[#allocation2 + $0x28] sm:$0xff]
        %v946 = vld [vmem:[#allocation2 + $0x30] sm:$0xff]
        %v947 = vld [vmem:[#allocation2 + $0x38] sm:$0xff]
        %v948 = vld [vmem:[#allocation2 + $0x40] sm:$0x3f]
        %v949 = vpack.c.bf16 %v941, %v940
        %v950 = vpack.c.bf16 %v943, %v942
        %v951 = vpack.c.bf16 %v945, %v944
        %v952 = vpack.c.bf16 %v947, %v946
        %v953 = vpack.c.bf16 %v948, %v948
        %v954 = vld [vmem:[%s3] sm:$0xf]
        %v955 = vld [vmem:[%s3 + $0x4] sm:$0xf]
        %v956 = vld [vmem:[%s3 + $0x8] sm:$0xf]
        %v957 = vld [vmem:[%s3 + $0xc] sm:$0xf]
        %v958 = vld [vmem:[%s3 + $0x10] sm:$0xf]
        %v959 = vld [vmem:[%s3 + $0x14] sm:$0xf]
        %v960 = vld [vmem:[%s3 + $0x18] sm:$0xf]
        %v961 = vld [vmem:[%s3 + $0x1c] sm:$0xf]
        %v962 = vld [vmem:[%s3 + $0x20] sm:$0xf]
        %v963 = vld [vmem:[%s4] sm:$0x1]
        %v965 = vlaneseq
        %v966 = vshrl.u32 %v965, 7
        %v967 = vsub.s32 0, %v966
        %v968 = vrot.slane %v963, %v967
        %v979 = vunpack.c.l.b16 %v954
        %v980 = vunpack.c.l.b16 %v955
        %v981 = vunpack.c.l.b16 %v956
        %v982 = vunpack.c.l.b16 %v957
        %v983 = vunpack.c.l.b16 %v958
        %v984 = vunpack.c.l.b16 %v959
        %v985 = vunpack.c.l.b16 %v960
        %v986 = vunpack.c.l.b16 %v961
        %v987 = vunpack.c.l.b16 %v962
        %v988 = vpack.c.b16 %v980, %v979
        %v989 = vpack.c.b16 %v982, %v981
        %v990 = vpack.c.b16 %v984, %v983
        %v991 = vpack.c.b16 %v986, %v985
        %v992 = vpack.c.b16 %v987, %v987
        %vm997 = vcmask 588800
        %v999 = vsel %vm997, %v949, 0
        %v1002 = vsel %vm997, %v950, 0
        %v1005 = vsel %vm997, %v951, 0
        %v1008 = vsel %vm997, %v952, 0
        %v1011 = vsel %vm997, %v953, 0
        %vm1013 = vcmask 1043456
        %v1015 = vsel %vm1013, %v992, 0
        %1017 = vmatprep.subr.bf16.mxu0 0
        %1018 = vmatpush1.bf16.msra.mxu0 0
        %1019 = vmatprep.subr.bf16.mxu0 0
        %1020 = vmatpush1.bf16.msra.mxu0 0
        %1021 = vmatprep.subr.bf16.mxu0 0
        %1022 = vmatpush1.bf16.msra.mxu0 0
        %1023 = vmatprep.subr.bf16.mxu0 0
        %1024 = vmatpush1.bf16.msra.mxu0 %v1015
        %1025 = vmatprep.subr.bf16.mxu0 0
        %1026 = vmatpush1.bf16.msra.mxu0 %v991
        %1027 = vmatprep.subr.bf16.mxu0 0
        %1028 = vmatpush1.bf16.msra.mxu0 %v990
        %1029 = vmatprep.subr.bf16.mxu0 0
        %1030 = vmatpush1.bf16.msra.mxu0 %v989
        %1031 = vmatprep.subr.bf16.mxu0 0
        %1032 = vmatpush1.bf16.msra.mxu0 %v988
        %1033 = vmatprep.subr.bf16.mxu0 0
        %1034 = vmatpush2.bf16.msra.mxu0 0
        %1035 = vmatprep.subr.bf16.mxu0 0
        %1036 = vmatpush2.bf16.msra.mxu0 0
        %1037 = vmatprep.subr.bf16.mxu0 0
        %1038 = vmatpush2.bf16.msra.mxu0 0
        %1039 = vmatprep.subr.bf16.mxu0 0
        %1040 = vmatpush2.bf16.msra.mxu0 0
        %1041 = vmatprep.subr.bf16.mxu0 0
        %1042 = vmatpush2.bf16.msra.mxu0 0
        %1043 = vmatprep.subr.bf16.mxu0 0
        %1044 = vmatpush2.bf16.msra.mxu0 0
        %1045 = vmatprep.subr.bf16.mxu0 0
        %1046 = vmatpush2.bf16.msra.mxu0 0
        %1047 = vmatprep.subr.bf16.mxu0 0
        %1048 = vmatpush2.bf16.msra.mxu0 0
        %1049 = vmatprep.mubr.bf16.mxu0 0
        %1050 = vmatmul.mubr.bf16.gmra.mxu0 %v999
        %v1051 = vpop.f32.mrf.mxu0
        %v1052 = vadd.f32 %v968, %v1051
        %v1053 = vpop.f32.mrf.mxu0
        %v1054 = vpop.f32.mrf.mxu0
        %v1055 = vadd.f32 %v968, %v1054
        %v1056 = vpop.f32.mrf.mxu0
        %1057 = vmatprep.mubr.bf16.mxu0 0
        %1058 = vmatmul.mubr.bf16.gmra.mxu0 %v1002
        %v1059 = vpop.f32.mrf.mxu0
        %v1060 = vadd.f32 %v968, %v1059
        %v1061 = vpop.f32.mrf.mxu0
        %v1062 = vpop.f32.mrf.mxu0
        %v1063 = vadd.f32 %v968, %v1062
        %v1064 = vpop.f32.mrf.mxu0
        %1065 = vmatprep.mubr.bf16.mxu0 0
        %1066 = vmatmul.mubr.bf16.gmra.mxu0 %v1005
        %v1067 = vpop.f32.mrf.mxu0
        %v1068 = vadd.f32 %v968, %v1067
        %v1069 = vpop.f32.mrf.mxu0
        %v1070 = vpop.f32.mrf.mxu0
        %v1071 = vadd.f32 %v968, %v1070
        %v1072 = vpop.f32.mrf.mxu0
        %1073 = vmatprep.mubr.bf16.mxu0 0
        %1074 = vmatmul.mubr.bf16.gmra.mxu0 %v1008
        %v1075 = vpop.f32.mrf.mxu0
        %v1076 = vadd.f32 %v968, %v1075
        %v1077 = vpop.f32.mrf.mxu0
        %v1078 = vpop.f32.mrf.mxu0
        %v1079 = vadd.f32 %v968, %v1078
        %v1080 = vpop.f32.mrf.mxu0
        %1081 = vmatprep.mubr.bf16.mxu0 0
        %1082 = vmatmul.mubr.bf16.gmra.mxu0 %v1011
        %v1083 = vpop.f32.mrf.mxu0
        %v1084 = vadd.f32 %v968, %v1083
        %v1085 = vpop.f32.mrf.mxu0
        %v1086 = vpop.f32.mrf.mxu0
        %v1087 = vpop.f32.mrf.mxu0
        %1088 = vdwg.mxu0
        %v1089 = vmax.f32 %v1052, 0.0
        %v1090 = vmax.f32 %v1055, 0.0
        %v1091 = vmax.f32 %v1060, 0.0
        %v1092 = vmax.f32 %v1063, 0.0
        %v1093 = vmax.f32 %v1068, 0.0
        %v1094 = vmax.f32 %v1071, 0.0
        %v1095 = vmax.f32 %v1076, 0.0
        %v1096 = vmax.f32 %v1079, 0.0
        %v1097 = vmax.f32 %v1084, 0.0
        %vm1098 = vcmask 126976
        %1099 = vst.msk [vmem:[#allocation3] sm:$0x1f] %vm1098, %v1089
        %vm1100 = vcmask 130055
        %1101 = vst.msk [vmem:[#allocation3 - $0x2] sm:$0x80] %vm1100, %v1089
        %vm1102 = vcmask 125952
        %1103 = vst.msk [vmem:[#allocation3 + $0x6] sm:$0xf] %vm1102, %v1090
        %vm1104 = vcmask 130054
        %1105 = vst.msk [vmem:[#allocation3 + $0x4] sm:$0xc0] %vm1104, %v1090
        %vm1106 = vcmask 124928
        %1107 = vst.msk [vmem:[#allocation3 + $0xc] sm:$0x7] %vm1106, %v1091
        %vm1108 = vcmask 130053
        %1109 = vst.msk [vmem:[#allocation3 + $0xa] sm:$0xe0] %vm1108, %v1091
        %vm1110 = vcmask 123904
        %1111 = vst.msk [vmem:[#allocation3 + $0x12] sm:$0x3] %vm1110, %v1092
        %vm1112 = vcmask 130052
        %1113 = vst.msk [vmem:[#allocation3 + $0x10] sm:$0xf0] %vm1112, %v1092
        %vm1114 = vcmask 122880
        %1115 = vst.msk [vmem:[#allocation3 + $0x18] sm:$0x1] %vm1114, %v1093
        %v1116 = vld [vmem:[#allocation3] sm:$0xff]
        %v1117 = vld [vmem:[#allocation3 + $0x8] sm:$0xff]
        %v1118 = vld [vmem:[#allocation3 + $0x10] sm:$0xff]
        %v1119 = vld [vmem:[#allocation3 + $0x18] sm:$0x1]
        %1120 = vxpose.xlu0.b32.start [1/16] %v1116, 128
        %1121 = vxpose.xlu0.b32.cont [2/16] %v1117, 128
        %1122 = vxpose.xlu0.b32.cont [3/16] %v1118, 128
        %1123 = vxpose.xlu0.b32.cont [4/16] %v1119, 128
        %1124 = vxpose.xlu0.b32.cont [5/16] 0.0, 128
        %1125 = vxpose.xlu0.b32.cont [6/16] 0.0, 128
        %1126 = vxpose.xlu0.b32.cont [7/16] 0.0, 128
        %1127 = vxpose.xlu0.b32.cont [8/16] 0.0, 128
        %1128 = vxpose.xlu0.b32.cont [9/16] 0.0, 128
        %1129 = vxpose.xlu0.b32.cont [10/16] 0.0, 128
        %1130 = vxpose.xlu0.b32.cont [11/16] 0.0, 128
        %1131 = vxpose.xlu0.b32.cont [12/16] 0.0, 128
        %1132 = vxpose.xlu0.b32.cont [13/16] 0.0, 128
        %1133 = vxpose.xlu0.b32.cont [14/16] 0.0, 128
        %1134 = vxpose.xlu0.b32.cont [15/16] 0.0, 128
        %1135 = vxpose.xlu0.b32.end [16/16] 0.0, 128
        %v1136 = vpop.trf.xlu0
        %v1137 = vpop.trf.xlu0
        %v1138 = vpop.trf.xlu0
        %v1139 = vpop.trf.xlu0
        %v1140 = vpop.trf.xlu0
        %v1141 = vpop.trf.xlu0
        %v1142 = vpop.trf.xlu0
        %v1143 = vpop.trf.xlu0
        %v1144 = vpop.trf.xlu0
        %v1145 = vpop.trf.xlu0
        %v1146 = vpop.trf.xlu0
        %v1147 = vpop.trf.xlu0
        %v1148 = vpop.trf.xlu0
        %v1149 = vpop.trf.xlu0
        %v1150 = vpop.trf.xlu0
        %v1151 = vpop.trf.xlu0
        %vm1152 = vcmask 196608
        %1153 = vst.msk [vmem:[#allocation4] sm:$0x1] %vm1152, %v1136
        %v1156 = vunpack.c.l.s4 1983009808
        %v1157 = vunpack.c.0.s8 %v1156
        %v1158 = vlaneseq
        %v1159 = vshrl.u32 %v1158, 7
        %v1160 = vsub.s32 %v1157, %v1159
        %v1161 = vrot.slane %v1136, %v1160
        %v1162 = vrot.slane %v1161, 7
        %v1163 = vrot.slane %v1162, 2
        %1164 = vrot.lane.b32.xlu0 %v1163, 25
        %v1165 = vpop.permute.xlu0 %1164
        %vm1167 = vcmask 401608
        %1168 = vst.msk [vmem:[#allocation4] sm:$0x1] %vm1167, %v1165
        %v1169 = vcombine.high %v1161, %v1161
        %1170 = vrot.lane.b32.xlu0 %v1169, 50
        %v1171 = vpop.permute.xlu0 %1170
        %vm1173 = vcmask 606608
        %1174 = vst.msk [vmem:[#allocation4] sm:$0x1] %vm1173, %v1171
        %v1175 = vrot.slane %v1169, 7
        %v1176 = vrot.slane %v1175, 2
        %1177 = vrot.lane.b32.xlu0 %v1176, 75
        %v1178 = vpop.permute.xlu0 %1177
        %vm1180 = vcmask 811608
        %1181 = vst.msk [vmem:[#allocation4] sm:$0x1] %vm1180, %v1178
        %v1182 = vcombine.high %v1136, %v1136
        %v1184 = vunpack.c.l.s4 1983009808
        %v1185 = vunpack.c.0.s8 %v1184
        %v1186 = vlaneseq
        %v1187 = vshrl.u32 %v1186, 7
        %v1188 = vsub.s32 %v1185, %v1187
        %v1189 = vrot.slane %v1182, %v1188
        %1190 = vrot.lane.b32.xlu0 %v1189, 100
        %v1191 = vpop.permute.xlu0 %1190
        %vm1193 = vcmask 1016608
        %1194 = vst.msk [vmem:[#allocation4] sm:$0x1] %vm1193, %v1191
        %v1195 = vrot.slane %v1189, 7
        %v1196 = vrot.slane %v1195, 2
        %1197 = vrot.lane.b32.xlu0 %v1196, 125
        %v1198 = vpop.permute.xlu0 %1197
        %v1199 = vrot.slane %v1198, 6
        %vm1200 = vcmask 1022976
        %v1201 = vsel %vm1200, %v1199, %v1198
        %vm1203 = vcmask 1041384
        %vm1204 = vcmask 174082
        %vm1205 = vmor %vm1204, %vm1203
        %1206 = vst.msk [vmem:[#allocation4] sm:$0x5] %vm1205, %v1201
        %v1207 = vcombine.high %v1189, %v1189
        %1208 = vrot.lane.b32.xlu0 %v1207, 22
        %v1209 = vpop.permute.xlu0 %1208
        %vm1211 = vcmask 377008
        %1212 = vst.msk [vmem:[#allocation4 + $0x2] sm:$0x1] %vm1211, %v1209
        %v1213 = vrot.slane %v1207, 7
        %v1214 = vrot.slane %v1213, 2
        %1215 = vrot.lane.b32.xlu0 %v1214, 47
        %v1216 = vpop.permute.xlu0 %1215
        %vm1218 = vcmask 582008
        %1219 = vst.msk [vmem:[#allocation4 + $0x2] sm:$0x1] %vm1218, %v1216
        %v1222 = vunpack.c.l.s4 1983009808
        %v1223 = vunpack.c.0.s8 %v1222
        %v1224 = vlaneseq
        %v1225 = vshrl.u32 %v1224, 7
        %v1226 = vsub.s32 %v1223, %v1225
        %v1227 = vrot.slane %v1137, %v1226
        %1228 = vrot.lane.b32.xlu0 %v1227, 72
        %v1229 = vpop.permute.xlu0 %1228
        %vm1231 = vcmask 787008
        %1232 = vst.msk [vmem:[#allocation4 + $0x2] sm:$0x1] %vm1231, %v1229
        %v1233 = vrot.slane %v1227, 7
        %v1234 = vrot.slane %v1233, 2
        %1235 = vrot.lane.b32.xlu0 %v1234, 97
        %v1236 = vpop.permute.xlu0 %1235
        %vm1238 = vcmask 992008
        %1239 = vst.msk [vmem:[#allocation4 + $0x2] sm:$0x1] %vm1238, %v1236
        %v1240 = vcombine.high %v1227, %v1227
        %1241 = vrot.lane.b32.xlu0 %v1240, 122
        %v1242 = vpop.permute.xlu0 %1241
        %v1243 = vrot.slane %v1242, 6
        %vm1244 = vcmask 998400
        %v1245 = vsel %vm1244, %v1243, %v1242
        %vm1247 = vcmask 1041360
        %vm1248 = vcmask 149506
        %vm1249 = vmor %vm1248, %vm1247
        %1250 = vst.msk [vmem:[#allocation4 + $0x2] sm:$0x5] %vm1249, %v1245
        %v1251 = vrot.slane %v1240, 7
        %v1252 = vrot.slane %v1251, 2
        %1253 = vrot.lane.b32.xlu0 %v1252, 19
        %v1254 = vpop.permute.xlu0 %1253
        %vm1256 = vcmask 352408
        %1257 = vst.msk [vmem:[#allocation4 + $0x4] sm:$0x1] %vm1256, %v1254
        %v1258 = vcombine.high %v1137, %v1137
        %v1260 = vunpack.c.l.s4 1983009808
        %v1261 = vunpack.c.0.s8 %v1260
        %v1262 = vlaneseq
        %v1263 = vshrl.u32 %v1262, 7
        %v1264 = vsub.s32 %v1261, %v1263
        %v1265 = vrot.slane %v1258, %v1264
        %1266 = vrot.lane.b32.xlu0 %v1265, 44
        %v1267 = vpop.permute.xlu0 %1266
        %vm1269 = vcmask 557408
        %1270 = vst.msk [vmem:[#allocation4 + $0x4] sm:$0x1] %vm1269, %v1267
        %v1271 = vrot.slane %v1265, 7
        %v1272 = vrot.slane %v1271, 2
        %1273 = vrot.lane.b32.xlu0 %v1272, 69
        %v1274 = vpop.permute.xlu0 %1273
        %vm1276 = vcmask 762408
        %1277 = vst.msk [vmem:[#allocation4 + $0x4] sm:$0x1] %vm1276, %v1274
        %v1278 = vcombine.high %v1265, %v1265
        %1279 = vrot.lane.b32.xlu0 %v1278, 94
        %v1280 = vpop.permute.xlu0 %1279
        %vm1282 = vcmask 967408
        %1283 = vst.msk [vmem:[#allocation4 + $0x4] sm:$0x1] %vm1282, %v1280
        %v1284 = vrot.slane %v1278, 7
        %v1285 = vrot.slane %v1284, 2
        %1286 = vrot.lane.b32.xlu0 %v1285, 119
        %v1287 = vpop.permute.xlu0 %1286
        %v1288 = vrot.slane %v1287, 6
        %vm1289 = vcmask 973824
        %v1290 = vsel %vm1289, %v1288, %v1287
        %vm1292 = vcmask 1041336
        %vm1293 = vcmask 124930
        %vm1294 = vmor %vm1293, %vm1292
        %1295 = vst.msk [vmem:[#allocation4 + $0x4] sm:$0x5] %vm1294, %v1290
        %vm1296 = vcmask 130051
        %1297 = vst.msk [vmem:[#allocation3 - $0x3] sm:$0xf8] %vm1296, %v1093
        %vm1298 = vcmask 129026
        %1299 = vst.msk [vmem:[#allocation3 + $0x3] sm:$0x7c] %vm1298, %v1094
        %vm1300 = vcmask 128001
        %1301 = vst.msk [vmem:[#allocation3 + $0x9] sm:$0x3e] %vm1300, %v1095
        %1302 = vst.msk [vmem:[#allocation3 + $0xf] sm:$0x1f] %vm1098, %v1096
        %1303 = vst.msk [vmem:[#allocation3 + $0xd] sm:$0x80] %vm1100, %v1096
        %1304 = vst.msk [vmem:[#allocation3 + $0x15] sm:$0xf] %vm1102, %v1097
        %v1305 = vld [vmem:[#allocation3] sm:$0xff]
        %v1306 = vld [vmem:[#allocation3 + $0x8] sm:$0xff]
        %v1307 = vld [vmem:[#allocation3 + $0x10] sm:$0xff]
        %v1308 = vld [vmem:[#allocation3 + $0x18] sm:$0x1]
        %1309 = vxpose.xlu0.b32.start [1/16] %v1305, 128
        %1310 = vxpose.xlu0.b32.cont [2/16] %v1306, 128
        %1311 = vxpose.xlu0.b32.cont [3/16] %v1307, 128
        %1312 = vxpose.xlu0.b32.cont [4/16] %v1308, 128
        %1313 = vxpose.xlu0.b32.cont [5/16] 0.0, 128
        %1314 = vxpose.xlu0.b32.cont [6/16] 0.0, 128
        %1315 = vxpose.xlu0.b32.cont [7/16] 0.0, 128
        %1316 = vxpose.xlu0.b32.cont [8/16] 0.0, 128
        %1317 = vxpose.xlu0.b32.cont [9/16] 0.0, 128
        %1318 = vxpose.xlu0.b32.cont [10/16] 0.0, 128
        %1319 = vxpose.xlu0.b32.cont [11/16] 0.0, 128
        %1320 = vxpose.xlu0.b32.cont [12/16] 0.0, 128
        %1321 = vxpose.xlu0.b32.cont [13/16] 0.0, 128
        %1322 = vxpose.xlu0.b32.cont [14/16] 0.0, 128
        %1323 = vxpose.xlu0.b32.cont [15/16] 0.0, 128
        %1324 = vxpose.xlu0.b32.end [16/16] 0.0, 128
        %v1325 = vpop.trf.xlu0
        %v1326 = vpop.trf.xlu0
        %v1327 = vpop.trf.xlu0
        %v1328 = vpop.trf.xlu0
        %v1329 = vpop.trf.xlu0
        %v1330 = vpop.trf.xlu0
        %v1331 = vpop.trf.xlu0
        %v1332 = vpop.trf.xlu0
        %v1333 = vpop.trf.xlu0
        %v1334 = vpop.trf.xlu0
        %v1335 = vpop.trf.xlu0
        %v1336 = vpop.trf.xlu0
        %v1337 = vpop.trf.xlu0
        %v1338 = vpop.trf.xlu0
        %v1339 = vpop.trf.xlu0
        %v1340 = vpop.trf.xlu0
        %1341 = vst.msk [vmem:[#allocation4 + $0x1] sm:$0x1] %vm1152, %v1325
        %v1344 = vunpack.c.l.s4 1983009808
        %v1345 = vunpack.c.0.s8 %v1344
        %v1346 = vlaneseq
        %v1347 = vshrl.u32 %v1346, 7
        %v1348 = vsub.s32 %v1345, %v1347
        %v1349 = vrot.slane %v1325, %v1348
        %v1350 = vrot.slane %v1349, 7
        %v1351 = vrot.slane %v1350, 2
        %1352 = vrot.lane.b32.xlu0 %v1351, 25
        %v1353 = vpop.permute.xlu0 %1352
        %1355 = vst.msk [vmem:[#allocation4 + $0x1] sm:$0x1] %vm1167, %v1353
        %v1356 = vcombine.high %v1349, %v1349
        %1357 = vrot.lane.b32.xlu0 %v1356, 50
        %v1358 = vpop.permute.xlu0 %1357
        %1360 = vst.msk [vmem:[#allocation4 + $0x1] sm:$0x1] %vm1173, %v1358
        %v1361 = vrot.slane %v1356, 7
        %v1362 = vrot.slane %v1361, 2
        %1363 = vrot.lane.b32.xlu0 %v1362, 75
        %v1364 = vpop.permute.xlu0 %1363
        %1366 = vst.msk [vmem:[#allocation4 + $0x1] sm:$0x1] %vm1180, %v1364
        %v1367 = vcombine.high %v1325, %v1325
        %v1369 = vunpack.c.l.s4 1983009808
        %v1370 = vunpack.c.0.s8 %v1369
        %v1371 = vlaneseq
        %v1372 = vshrl.u32 %v1371, 7
        %v1373 = vsub.s32 %v1370, %v1372
        %v1374 = vrot.slane %v1367, %v1373
        %1375 = vrot.lane.b32.xlu0 %v1374, 100
        %v1376 = vpop.permute.xlu0 %1375
        %1378 = vst.msk [vmem:[#allocation4 + $0x1] sm:$0x1] %vm1193, %v1376
        %v1379 = vrot.slane %v1374, 7
        %v1380 = vrot.slane %v1379, 2
        %1381 = vrot.lane.b32.xlu0 %v1380, 125
        %v1382 = vpop.permute.xlu0 %1381
        %v1383 = vrot.slane %v1382, 6
        %v1384 = vsel %vm1200, %v1383, %v1382
        %1386 = vst.msk [vmem:[#allocation4 + $0x1] sm:$0x5] %vm1205, %v1384
        %v1387 = vcombine.high %v1374, %v1374
        %1388 = vrot.lane.b32.xlu0 %v1387, 22
        %v1389 = vpop.permute.xlu0 %1388
        %1391 = vst.msk [vmem:[#allocation4 + $0x3] sm:$0x1] %vm1211, %v1389
        %v1392 = vrot.slane %v1387, 7
        %v1393 = vrot.slane %v1392, 2
        %1394 = vrot.lane.b32.xlu0 %v1393, 47
        %v1395 = vpop.permute.xlu0 %1394
        %1397 = vst.msk [vmem:[#allocation4 + $0x3] sm:$0x1] %vm1218, %v1395
        %v1400 = vunpack.c.l.s4 1983009808
        %v1401 = vunpack.c.0.s8 %v1400
        %v1402 = vlaneseq
        %v1403 = vshrl.u32 %v1402, 7
        %v1404 = vsub.s32 %v1401, %v1403
        %v1405 = vrot.slane %v1326, %v1404
        %1406 = vrot.lane.b32.xlu0 %v1405, 72
        %v1407 = vpop.permute.xlu0 %1406
        %1409 = vst.msk [vmem:[#allocation4 + $0x3] sm:$0x1] %vm1231, %v1407
        %v1410 = vrot.slane %v1405, 7
        %v1411 = vrot.slane %v1410, 2
        %1412 = vrot.lane.b32.xlu0 %v1411, 97
        %v1413 = vpop.permute.xlu0 %1412
        %1415 = vst.msk [vmem:[#allocation4 + $0x3] sm:$0x1] %vm1238, %v1413
        %v1416 = vcombine.high %v1405, %v1405
        %1417 = vrot.lane.b32.xlu0 %v1416, 122
        %v1418 = vpop.permute.xlu0 %1417
        %v1419 = vrot.slane %v1418, 6
        %v1420 = vsel %vm1244, %v1419, %v1418
        %1422 = vst.msk [vmem:[#allocation4 + $0x3] sm:$0x5] %vm1249, %v1420
        %v1423 = vrot.slane %v1416, 7
        %v1424 = vrot.slane %v1423, 2
        %1425 = vrot.lane.b32.xlu0 %v1424, 19
        %v1426 = vpop.permute.xlu0 %1425
        %1428 = vst.msk [vmem:[#allocation4 + $0x5] sm:$0x1] %vm1256, %v1426
        %v1429 = vcombine.high %v1326, %v1326
        %v1431 = vunpack.c.l.s4 1983009808
        %v1432 = vunpack.c.0.s8 %v1431
        %v1433 = vlaneseq
        %v1434 = vshrl.u32 %v1433, 7
        %v1435 = vsub.s32 %v1432, %v1434
        %v1436 = vrot.slane %v1429, %v1435
        %1437 = vrot.lane.b32.xlu0 %v1436, 44
        %v1438 = vpop.permute.xlu0 %1437
        %1440 = vst.msk [vmem:[#allocation4 + $0x5] sm:$0x1] %vm1269, %v1438
        %v1441 = vrot.slane %v1436, 7
        %v1442 = vrot.slane %v1441, 2
        %1443 = vrot.lane.b32.xlu0 %v1442, 69
        %v1444 = vpop.permute.xlu0 %1443
        %1446 = vst.msk [vmem:[#allocation4 + $0x5] sm:$0x1] %vm1276, %v1444
        %v1447 = vcombine.high %v1436, %v1436
        %1448 = vrot.lane.b32.xlu0 %v1447, 94
        %v1449 = vpop.permute.xlu0 %1448
        %1451 = vst.msk [vmem:[#allocation4 + $0x5] sm:$0x1] %vm1282, %v1449
        %v1452 = vrot.slane %v1447, 7
        %v1453 = vrot.slane %v1452, 2
        %1454 = vrot.lane.b32.xlu0 %v1453, 119
        %v1455 = vpop.permute.xlu0 %1454
        %v1456 = vrot.slane %v1455, 6
        %v1457 = vsel %vm1289, %v1456, %v1455
        %1459 = vst.msk [vmem:[#allocation4 + $0x5] sm:$0x5] %vm1294, %v1457
        %v1460 = vld [vmem:[#allocation4] sm:$0xff]
        %vm1461 = vcmask 1043458
        %vm1462 = vmor %vm1461, %vm439
        %vm1463 = vcmask 1045508
        %vm1464 = vmor %vm1463, %vm1462
        %vm1465 = vmor %vm1104, %vm1464
        %1466 = vst.msk [vmem:[%s317] sm:$0xff] %vm1465, %v1460
        %v1468 = vcombine.high %v1460, %v1460
        %v1470 = vunpack.c.l.s4 1983009808
        %v1471 = vunpack.c.0.s8 %v1470
        %v1472 = vlaneseq
        %v1473 = vshrl.u32 %v1472, 7
        %v1474 = vsub.s32 %v1471, %v1473
        %v1475 = vrot.slane %v1460, %v1474
        %v1477 = vunpack.c.l.s4 1983009808
        %v1478 = vunpack.c.0.s8 %v1477
        %v1479 = vlaneseq
        %v1480 = vshrl.u32 %v1479, 7
        %v1481 = vsub.s32 %v1478, %v1480
        %v1482 = vrot.slane %v1468, %v1481
        %v1483 = vcombine.high %v1475, %v1475
        %v1484 = vcombine.high %v1482, %v1482
        %v1489 = vpack.c.bf16 %v1475, %v1475
        %v1490 = vpack.c.bf16 %v1483, %v1483
        %v1491 = vpack.c.bf16 %v1482, %v1482
        %v1492 = vpack.c.bf16 %v1484, %v1484
        %v1493 = vld [vmem:[#allocation5] sm:$0xf]
        %v1494 = vld [vmem:[#allocation5 + $0x4] sm:$0xf]
        %v1495 = vld [vmem:[#allocation5 + $0x8] sm:$0xf]
        %v1496 = vld [vmem:[#allocation5 + $0xc] sm:$0xf]
        %v1497 = vld [vmem:[#allocation5 + $0x10] sm:$0xf]
        %v1498 = vld [vmem:[#allocation5 + $0x14] sm:$0xf]
        %v1499 = vld [vmem:[#allocation5 + $0x18] sm:$0xf]
        %v1500 = vld [vmem:[#allocation5 + $0x1c] sm:$0xf]
        %v1501 = vld [vmem:[#allocation5 + $0x20] sm:$0xf]
        %v1502 = vld [vmem:[#allocation5 + $0x24] sm:$0xf]
        %v1503 = vld [vmem:[#allocation5 + $0x28] sm:$0xf]
        %v1504 = vld [vmem:[#allocation5 + $0x2c] sm:$0xf]
        %v1505 = vld [vmem:[#allocation5 + $0x30] sm:$0xf]
        %v1506 = vld [vmem:[#allocation5 + $0x34] sm:$0xf]
        %v1507 = vld [vmem:[#allocation5 + $0x38] sm:$0xf]
        %v1508 = vld [vmem:[#allocation5 + $0x3c] sm:$0xf]
        %v1509 = vld [vmem:[#allocation5 + $0x40] sm:$0xf]
        %v1510 = vld [vmem:[#allocation5 + $0x44] sm:$0xf]
        %v1511 = vld [vmem:[#allocation5 + $0x48] sm:$0xf]
        %v1512 = vld [vmem:[#allocation5 + $0x4c] sm:$0xf]
        %v1513 = vld [vmem:[#allocation5 + $0x50] sm:$0xf]
        %v1514 = vld [vmem:[#allocation5 + $0x54] sm:$0xf]
        %v1515 = vld [vmem:[#allocation5 + $0x58] sm:$0xf]
        %v1516 = vld [vmem:[#allocation5 + $0x5c] sm:$0xf]
        %v1517 = vld [vmem:[#allocation5 + $0x60] sm:$0xf]
        %v1518 = vld [vmem:[#allocation5 + $0x64] sm:$0xf]
        %v1519 = vld [vmem:[#allocation5 + $0x68] sm:$0xf]
        %v1520 = vld [vmem:[#allocation5 + $0x6c] sm:$0xf]
        %v1521 = vld [vmem:[#allocation5 + $0x70] sm:$0xf]
        %v1522 = vld [vmem:[#allocation5 + $0x74] sm:$0xf]
        %v1523 = vld [vmem:[#allocation5 + $0x78] sm:$0xf]
        %v1524 = vld [vmem:[#allocation5 + $0x7c] sm:$0xf]
        %v1525 = vld [vmem:[#allocation5 + $0x80] sm:$0xf]
        %v1526 = vld [vmem:[#allocation5 + $0x84] sm:$0xf]
        %v1527 = vld [vmem:[#allocation5 + $0x88] sm:$0xf]
        %v1528 = vld [vmem:[#allocation5 + $0x8c] sm:$0xf]
        %v1529 = vld [vmem:[#allocation5 + $0x90] sm:$0xf]
        %v1530 = vld [vmem:[#allocation5 + $0x94] sm:$0xf]
        %v1531 = vld [vmem:[#allocation5 + $0x98] sm:$0xf]
        %v1532 = vld [vmem:[#allocation5 + $0x9c] sm:$0xf]
        %v1533 = vld [vmem:[#allocation5 + $0xa0] sm:$0xf]
        %v1534 = vld [vmem:[#allocation5 + $0xa4] sm:$0xf]
        %v1535 = vld [vmem:[#allocation5 + $0xa8] sm:$0xf]
        %v1536 = vld [vmem:[#allocation5 + $0xac] sm:$0xf]
        %v1537 = vld [vmem:[#allocation5 + $0xb0] sm:$0xf]
        %v1538 = vld [vmem:[#allocation5 + $0xb4] sm:$0xf]
        %v1539 = vld [vmem:[#allocation5 + $0xb8] sm:$0xf]
        %v1540 = vld [vmem:[#allocation5 + $0xbc] sm:$0xf]
        %v1541 = vld [vmem:[#allocation5 + $0xc0] sm:$0xf]
        %v1542 = vld [vmem:[#allocation5 + $0xc4] sm:$0xf]
        %v1543 = vld [vmem:[%s6] sm:$0x1]
        %v1545 = vlaneseq
        %v1546 = vshrl.u32 %v1545, 7
        %v1547 = vsub.s32 0, %v1546
        %v1548 = vrot.slane %v1543, %v1547
        %v1600 = vunpack.c.l.b16 %v1493
        %v1601 = vunpack.c.l.b16 %v1494
        %v1602 = vunpack.c.l.b16 %v1495
        %v1603 = vunpack.c.l.b16 %v1496
        %v1604 = vunpack.c.l.b16 %v1497
        %v1605 = vunpack.c.l.b16 %v1498
        %v1606 = vunpack.c.l.b16 %v1499
        %v1607 = vunpack.c.l.b16 %v1500
        %v1608 = vunpack.c.l.b16 %v1501
        %v1609 = vunpack.c.l.b16 %v1502
        %v1610 = vunpack.c.l.b16 %v1503
        %v1611 = vunpack.c.l.b16 %v1504
        %v1612 = vunpack.c.l.b16 %v1505
        %v1613 = vunpack.c.l.b16 %v1506
        %v1614 = vunpack.c.l.b16 %v1507
        %v1615 = vunpack.c.l.b16 %v1508
        %v1616 = vunpack.c.l.b16 %v1509
        %v1617 = vunpack.c.l.b16 %v1510
        %v1618 = vunpack.c.l.b16 %v1511
        %v1619 = vunpack.c.l.b16 %v1512
        %v1620 = vunpack.c.l.b16 %v1513
        %v1621 = vunpack.c.l.b16 %v1514
        %v1622 = vunpack.c.l.b16 %v1515
        %v1623 = vunpack.c.l.b16 %v1516
        %v1624 = vunpack.c.l.b16 %v1517
        %v1625 = vunpack.c.l.b16 %v1518
        %v1626 = vunpack.c.l.b16 %v1519
        %v1627 = vunpack.c.l.b16 %v1520
        %v1628 = vunpack.c.l.b16 %v1521
        %v1629 = vunpack.c.l.b16 %v1522
        %v1630 = vunpack.c.l.b16 %v1523
        %v1631 = vunpack.c.l.b16 %v1524
        %v1632 = vunpack.c.l.b16 %v1525
        %v1633 = vunpack.c.l.b16 %v1526
        %v1634 = vunpack.c.l.b16 %v1527
        %v1635 = vunpack.c.l.b16 %v1528
        %v1636 = vunpack.c.l.b16 %v1529
        %v1637 = vunpack.c.l.b16 %v1530
        %v1638 = vunpack.c.l.b16 %v1531
        %v1639 = vunpack.c.l.b16 %v1532
        %v1640 = vunpack.c.l.b16 %v1533
        %v1641 = vunpack.c.l.b16 %v1534
        %v1642 = vunpack.c.l.b16 %v1535
        %v1643 = vunpack.c.l.b16 %v1536
        %v1644 = vunpack.c.l.b16 %v1537
        %v1645 = vunpack.c.l.b16 %v1538
        %v1646 = vunpack.c.l.b16 %v1539
        %v1647 = vunpack.c.l.b16 %v1540
        %v1648 = vunpack.c.l.b16 %v1541
        %v1649 = vunpack.c.l.b16 %v1542
        %v1650 = vpack.c.b16 %v1601, %v1600
        %v1651 = vpack.c.b16 %v1603, %v1602
        %v1652 = vpack.c.b16 %v1605, %v1604
        %v1653 = vpack.c.b16 %v1607, %v1606
        %v1654 = vpack.c.b16 %v1609, %v1608
        %v1655 = vpack.c.b16 %v1611, %v1610
        %v1656 = vpack.c.b16 %v1613, %v1612
        %v1657 = vpack.c.b16 %v1615, %v1614
        %v1658 = vpack.c.b16 %v1617, %v1616
        %v1659 = vpack.c.b16 %v1619, %v1618
        %v1660 = vpack.c.b16 %v1621, %v1620
        %v1661 = vpack.c.b16 %v1623, %v1622
        %v1662 = vpack.c.b16 %v1625, %v1624
        %v1663 = vpack.c.b16 %v1627, %v1626
        %v1664 = vpack.c.b16 %v1629, %v1628
        %v1665 = vpack.c.b16 %v1631, %v1630
        %v1666 = vpack.c.b16 %v1633, %v1632
        %v1667 = vpack.c.b16 %v1635, %v1634
        %v1668 = vpack.c.b16 %v1637, %v1636
        %v1669 = vpack.c.b16 %v1639, %v1638
        %v1670 = vpack.c.b16 %v1641, %v1640
        %v1671 = vpack.c.b16 %v1643, %v1642
        %v1672 = vpack.c.b16 %v1645, %v1644
        %v1673 = vpack.c.b16 %v1647, %v1646
        %v1674 = vpack.c.b16 %v1649, %v1648
        %vm1700 = vcmask 130048
        %v1702 = vsel %vm1700, %v1492, 0
        %1704 = vmatprep.subr.bf16.mxu0 0
        %1705 = vmatpush1.bf16.msra.mxu0 %v1657
        %1706 = vmatprep.subr.bf16.mxu0 0
        %1707 = vmatpush1.bf16.msra.mxu0 %v1656
        %1708 = vmatprep.subr.bf16.mxu0 0
        %1709 = vmatpush1.bf16.msra.mxu0 %v1655
        %1710 = vmatprep.subr.bf16.mxu0 0
        %1711 = vmatpush1.bf16.msra.mxu0 %v1654
        %1712 = vmatprep.subr.bf16.mxu0 0
        %1713 = vmatpush1.bf16.msra.mxu0 %v1653
        %1714 = vmatprep.subr.bf16.mxu0 0
        %1715 = vmatpush1.bf16.msra.mxu0 %v1652
        %1716 = vmatprep.subr.bf16.mxu0 0
        %1717 = vmatpush1.bf16.msra.mxu0 %v1651
        %1718 = vmatprep.subr.bf16.mxu0 0
        %1719 = vmatpush1.bf16.msra.mxu0 %v1650
        %1720 = vmatprep.subr.bf16.mxu0 0
        %1721 = vmatpush2.bf16.msra.mxu0 %v1665
        %1722 = vmatprep.subr.bf16.mxu0 0
        %1723 = vmatpush2.bf16.msra.mxu0 %v1664
        %1724 = vmatprep.subr.bf16.mxu0 0
        %1725 = vmatpush2.bf16.msra.mxu0 %v1663
        %1726 = vmatprep.subr.bf16.mxu0 0
        %1727 = vmatpush2.bf16.msra.mxu0 %v1662
        %1728 = vmatprep.subr.bf16.mxu0 0
        %1729 = vmatpush2.bf16.msra.mxu0 %v1661
        %1730 = vmatprep.subr.bf16.mxu0 0
        %1731 = vmatpush2.bf16.msra.mxu0 %v1660
        %1732 = vmatprep.subr.bf16.mxu0 0
        %1733 = vmatpush2.bf16.msra.mxu0 %v1659
        %1734 = vmatprep.subr.bf16.mxu0 0
        %1735 = vmatpush2.bf16.msra.mxu0 %v1658
        %1736 = vmatprep.mubr.bf16.mxu0 %v1490
        %1737 = vmatmul.mubr.bf16.gmra.mxu0 %v1489
        %v1738 = vpop.f32.mrf.mxu0
        %v1739 = vadd.f32 %v1548, %v1738
        %v1740 = vpop.f32.mrf.mxu0
        %v1741 = vpop.f32.mrf.mxu0
        %v1742 = vpop.f32.mrf.mxu0
        %1743 = vdwg.mxu0
        %1744 = vmatprep.subr.bf16.mxu0 0
        %1745 = vmatpush1.bf16.msra.mxu0 %v1673
        %1746 = vmatprep.subr.bf16.mxu0 0
        %1747 = vmatpush1.bf16.msra.mxu0 %v1672
        %1748 = vmatprep.subr.bf16.mxu0 0
        %1749 = vmatpush1.bf16.msra.mxu0 %v1671
        %1750 = vmatprep.subr.bf16.mxu0 0
        %1751 = vmatpush1.bf16.msra.mxu0 %v1670
        %1752 = vmatprep.subr.bf16.mxu0 0
        %1753 = vmatpush1.bf16.msra.mxu0 %v1669
        %1754 = vmatprep.subr.bf16.mxu0 0
        %1755 = vmatpush1.bf16.msra.mxu0 %v1668
        %1756 = vmatprep.subr.bf16.mxu0 0
        %1757 = vmatpush1.bf16.msra.mxu0 %v1667
        %1758 = vmatprep.subr.bf16.mxu0 0
        %1759 = vmatpush1.bf16.msra.mxu0 %v1666
        %1760 = vmatprep.subr.bf16.mxu0 0
        %1761 = vmatpush2.bf16.msra.mxu0 0
        %1762 = vmatprep.subr.bf16.mxu0 0
        %1763 = vmatpush2.bf16.msra.mxu0 0
        %1764 = vmatprep.subr.bf16.mxu0 0
        %1765 = vmatpush2.bf16.msra.mxu0 0
        %1766 = vmatprep.subr.bf16.mxu0 0
        %1767 = vmatpush2.bf16.msra.mxu0 0
        %1768 = vmatprep.subr.bf16.mxu0 0
        %1769 = vmatpush2.bf16.msra.mxu0 0
        %1770 = vmatprep.subr.bf16.mxu0 0
        %1771 = vmatpush2.bf16.msra.mxu0 0
        %1772 = vmatprep.subr.bf16.mxu0 0
        %1773 = vmatpush2.bf16.msra.mxu0 0
        %1774 = vmatprep.subr.bf16.mxu0 0
        %1775 = vmatpush2.bf16.msra.mxu0 %v1674
        %1776 = vmatprep.mubr.bf16.mxu0 %v1702
        %1777 = vmatmul.mubr.bf16.gmra.mxu0 %v1491
        %v1778 = vpop.f32.mrf.mxu0
        %v1779 = vadd.f32 %v1739, %v1778
        %v1780 = vpop.f32.mrf.mxu0
        %v1781 = vpop.f32.mrf.mxu0
        %v1782 = vpop.f32.mrf.mxu0
        %1783 = vdwg.mxu0
        %1784 = vst [vmem:[%s324] sm:$0x3] %v1779
        %s1785 = sand.u32 %s187, 1
        %s1786 = scalar_lea.sflag [#allocation7], %s1785
        %s1787 = sand.u32 %s187, 1
        %s1788 = smul.addr %s1787, 8
        %s1789 = scalar_lea.vmem [#allocation8], %s1788
        %s1790 = sand.u32 %s213, 1
        %s1791 = scalar_lea.sflag [#allocation10], %s1790
        %s1792 = sand.u32 %s213, 1
        %s1793 = smul.addr %s1792, 2
        %s1794 = scalar_lea.vmem [#allocation9], %s1793
        // Predicated region
        $region53: #{tpu_custom_call.1} parent=47 // pred_check
          %p1795 = pneg %p197
        $region54: #{tpu_custom_call.1} parent=47 // pred_check_branch
          %1797 = sbr.rel (%p1795) target = $region56
        $region55: #{tpu_custom_call.1} parent=47 // pred_region
          %s1799 = ssub.s32 128, 128
          %1800 = vsyncadd %s1786, %s1799
          %s1801 = smul.addr %s27, 4
          %s1802 = smul.addr %s1801, 32
          %s1803 = scalar_lea.hbm %s7, %s1802
          %s1805 = sshll.u32 %s1789, 4
          %s1806 = int_to_ptr.vmem [resolvable:$true] %s1805
          %1808 = dma.vmem_to_hbm [thread:$0]  %s1806, 128, %s1803, %s1786
        $region56: #{tpu_custom_call.1} parent=47 // pred_fallthru
          _
        // Predicated region
        $region57: #{tpu_custom_call.1} parent=47 // pred_check
          %p1809 = pneg %p223
        $region58: #{tpu_custom_call.1} parent=47 // pred_check_branch
          %1811 = sbr.rel (%p1809) target = $region60
        $region59: #{tpu_custom_call.1} parent=47 // pred_region
          %s1813 = ssub.s32 32, 32
          %1814 = vsyncadd %s1791, %s1813
          %s1815 = smul.addr %s27, 32
          %s1816 = scalar_lea.hbm %s8, %s1815
          %s1818 = sshll.u32 %s1794, 4
          %s1819 = int_to_ptr.vmem [resolvable:$true] %s1818
          %1821 = dma.vmem_to_hbm [thread:$0]  %s1819, 32, %s1816, %s1791
        $region60: #{tpu_custom_call.1} parent=47 // pred_fallthru
          _
      $region48: #{tpu_custom_call.1} parent=5 // pred_fallthru
        _
      %p1822 = scmp.le.s32.totalorder 2, %s22
      // Predicated region
      $region61: #{tpu_custom_call.1} parent=5 // pred_check
        %p1823 = pneg %p1822
      $region62: #{tpu_custom_call.1} parent=5 // pred_check_branch
        %1825 = sbr.rel (%p1823) target = $region64
      $region63: #{tpu_custom_call.1} parent=5 // pred_region
        %s1826 = ssub.s32 %s22, 2
        // Predicated region
        $region65: #{tpu_custom_call.1} parent=63 // pred_check
          %p1827 = pneg %p203
        $region66: #{tpu_custom_call.1} parent=63 // pred_check_branch
          %1829 = sbr.rel (%p1827) target = $region68
        $region67: #{tpu_custom_call.1} parent=63 // pred_region
          %s1830 = sand.u32 %s188, 1
          %s1831 = scalar_lea.sflag [#allocation7], %s1830
          %s1832 = sand.u32 %s188, 1
          %s1833 = smul.addr %s1832, 8
          %s1834 = scalar_lea.vmem [#allocation8], %s1833
          %1835 = dma.done %s1831, 128
        $region68: #{tpu_custom_call.1} parent=63 // pred_fallthru
          _
        // Predicated region
        $region69: #{tpu_custom_call.1} parent=63 // pred_check
          %p1836 = pneg %p229
        $region70: #{tpu_custom_call.1} parent=63 // pred_check_branch
          %1838 = sbr.rel (%p1836) target = $region72
        $region71: #{tpu_custom_call.1} parent=63 // pred_region
          %s1839 = sand.u32 %s214, 1
          %s1840 = scalar_lea.sflag [#allocation10], %s1839
          %s1841 = sand.u32 %s214, 1
          %s1842 = smul.addr %s1841, 2
          %s1843 = scalar_lea.vmem [#allocation9], %s1842
          %1844 = dma.done %s1840, 32
        $region72: #{tpu_custom_call.1} parent=63 // pred_fallthru
          _
      $region64: #{tpu_custom_call.1} parent=5 // pred_fallthru
        _
    $region6: #{tpu_custom_call.1} parent=1 // loop_footer
      %s26 = sadd.s32 1, %s22
    $region7: #{tpu_custom_call.1} parent=1 // loop_footer_branch
      %21 = sbr.rel target = $region3
    $region8: #{tpu_custom_call.1} parent=1 // loop_exit
      _
    %1845 = vsyncpa [#allocation6], 1
    %s1846 = scalar_lea.sflag [#allocation6], 1
    %1847 = vsyncpa %s1846, 1
    %1848 = vsyncpa [#allocation7], 1
    %s1849 = scalar_lea.sflag [#allocation7], 1
    %1850 = vsyncpa %s1849, 1
    %1851 = vsyncpa [#allocation10], 1
    %s1852 = scalar_lea.sflag [#allocation10], 1
    %1853 = vsyncpa %s1852, 1

</llo_original>
